<compile_context>
chip_gen: v7x
topology: tpu7x:2x2x1
jax: 0.10.0
libtpu: 0.0.40
codegen_flags: <defaults>
</compile_context>

<pallas_src>
import functools

import jax
import jax.numpy as jnp
from jax import lax
from jax.experimental import pallas as pl
from jax.experimental.pallas import tpu as pltpu


def trittention_kernel(x_ref, lnw_ref, lnb_ref, w5_ref, b5_ref, wkt_ref,
                       wv1_ref, wo_ref, bo_ref, y_ref, z_acc, xn_scr,
                       *, heads, dim_head, seq, mxu_dtype):
    N, D, H = seq, dim_head, heads
    h = pl.program_id(1)          # head index (sequential "arbitrary" grid axis)
    cd = mxu_dtype

    # ---- LayerNorm (eps=1e-5, biased variance, affine) in f32; once per batch ----
    @pl.when(h == 0)
    def _():
        x = x_ref[0]                                          # (N, dim)
        mu = jnp.mean(x, axis=-1, keepdims=True)
        var = jnp.mean((x - mu) ** 2, axis=-1, keepdims=True)
        xn_scr[...] = (x - mu) * lax.rsqrt(var + 1e-5) * lnw_ref[...] + lnb_ref[...]

    xn = xn_scr[...]                                          # (N, dim), f32

    # ---- per-head a,b,c,d,e projection: (N, 5*D) ----
    proj = jnp.dot(xn.astype(cd), w5_ref[0],
                   preferred_element_type=jnp.float32) + b5_ref[0]
    a_h = proj[:, 0 * D:1 * D].astype(cd)
    b_h = proj[:, 1 * D:2 * D].astype(cd)
    c_h = proj[:, 2 * D:3 * D].astype(cd)
    d_h = proj[:, 3 * D:4 * D].astype(cd)
    e_h = proj[:, 4 * D:5 * D].astype(cd)

    # ---- score[r, p, q] = sum_{ijk} a[p,i] b[q,j] c[r,k] W_K[i,j,k] / D ----
    # s1[r, i*D+j] = sum_k c[r,k] W_K[i,j,k] / D      (1/D pre-folded into wkt)
    s1 = jnp.dot(c_h, wkt_ref[0], preferred_element_type=jnp.float32)      # (N, D*D)
    s1_3 = s1.reshape(N, D, D).astype(cd)                                  # [r, i, j]
    # T[r, i, q] = sum_j s1[r,i,j] b[q,j]       (batch r, 'bij,bqj->biq')
    b_b = jnp.broadcast_to(b_h[None], (N, N, D))                           # [r, q, j]
    t3 = lax.dot_general(s1_3, b_b, (((2,), (2,)), ((0,), (0,))),
                         preferred_element_type=jnp.float32)               # [r, i, q]
    # score[r, p, q] = sum_i a[p,i] T[r,i,q]    (batch r, 'bpi,biq->bpq')
    a_b = jnp.broadcast_to(a_h[None], (N, N, D))                           # [r, p, i]
    sc3 = lax.dot_general(a_b, t3.astype(cd), (((2,), (1,)), ((0,), (0,))),
                          preferred_element_type=jnp.float32)              # [r, p, q]
    score = sc3.reshape(N, N * N)          # softmax axis (p*N+q) is the lane axis

    # ---- softmax over the flattened (p, q) axis, f32 ----
    score = score - jnp.max(score, axis=-1, keepdims=True)
    p_exp = jnp.exp(score)
    attn = p_exp * pl.reciprocal(jnp.sum(p_exp, axis=-1, keepdims=True),
                                 approx=True)
    # TODO(synk): dropout not implemented (module is used with dropout=0.0 -> identity).

    # ---- v[(p,q), h3] = sum_{h1,h2} d[p,h1] e[q,h2] W_V[h1,h2,h3] ----
    v1 = jnp.dot(d_h, wv1_ref[0], preferred_element_type=jnp.float32)      # (N, D*D) [p, h2*D+h3]
    v1_3 = v1.reshape(N, D, D).astype(cd)                                  # [p, h2, h3]
    e_b = jnp.broadcast_to(e_h[None], (N, N, D))                           # [p, q, h2]
    v3 = lax.dot_general(e_b, v1_3, (((2,), (1,)), ((0,), (0,))),
                         preferred_element_type=jnp.float32)               # [p, q, h3]
    v2d = v3.reshape(N * N, D).astype(cd)                                  # same (p,q) flatten as attn

    # ---- z[r, h3] = sum_{pq} attn[r, pq] v[(p,q), h3];  stash per head ----
    z_acc[h] = jnp.dot(attn.astype(cd), v2d, preferred_element_type=jnp.float32)

    # ---- finalize at the last head: one fused (N, H*D) x (H*D, dim) matmul ----
    @pl.when(h == H - 1)
    def _():
        z_flat = jnp.concatenate([z_acc[i] for i in range(H)], axis=-1)    # (N, H*D), head-major
        y = jnp.dot(z_flat.astype(cd), wo_ref[...],
                    preferred_element_type=jnp.float32) + bo_ref[...]
        y_ref[0] = y.astype(y_ref.dtype)


def trittention_cube(x, params, *, heads, dim_head, mxu_dtype=jnp.bfloat16):
    B, N, dim = x.shape
    H, D = heads, dim_head

    # ---- weight re-layouts (pure glue, done once outside the kernel) ----
    # Per-head slice of the fused abcde projection: w5[h] : (dim, 5*D),
    # columns ordered [a_h | b_h | c_h | d_h | e_h]  (chunk-major within head).
    w5 = jnp.transpose(params['W_abcde'].reshape(dim, 5, H, D),
                       (2, 0, 1, 3)).reshape(H, dim, 5 * D).astype(mxu_dtype)
    b5 = jnp.transpose(params['b_abcde'].reshape(5, H, D),
                       (1, 0, 2)).reshape(H, 1, 5 * D)
    # wkt[h, k, i*D+j] = W_K[h, i, j, k] / D        (1/dim_head folded in)
    wkt = (jnp.transpose(params['W_K'], (0, 3, 1, 2)).reshape(H, D, D * D)
           * (1.0 / float(D))).astype(mxu_dtype)
    # wv1[h, h1, h2*D+h3] = W_V[h, h1, h2, h3]
    wv1 = params['W_V'].reshape(H, D, D * D).astype(mxu_dtype)
    wo = params['W_out'].astype(mxu_dtype)                     # (H*D, dim)

    lnw = params['ln_w'].reshape(1, dim)
    lnb = params['ln_b'].reshape(1, dim)
    bo = params['b_out'].reshape(1, dim)

    kernel = functools.partial(trittention_kernel, heads=H, dim_head=D,
                               seq=N, mxu_dtype=mxu_dtype)

    return pl.pallas_call(
        kernel,
        out_shape=jax.ShapeDtypeStruct((B, N, dim), x.dtype),
        grid=(B, H),
        in_specs=[
            pl.BlockSpec((1, N, dim), lambda b, h: (b, 0, 0)),        # x (per batch)
            pl.BlockSpec((1, dim), lambda b, h: (0, 0)),              # ln weight
            pl.BlockSpec((1, dim), lambda b, h: (0, 0)),              # ln bias
            pl.BlockSpec((1, dim, 5 * D), lambda b, h: (h, 0, 0)),    # W_abcde (per head)
            pl.BlockSpec((1, 1, 5 * D), lambda b, h: (h, 0, 0)),      # b_abcde (per head)
            pl.BlockSpec((1, D, D * D), lambda b, h: (h, 0, 0)),      # W_K^T / D (per head)
            pl.BlockSpec((1, D, D * D), lambda b, h: (h, 0, 0)),      # W_V (per head)
            pl.BlockSpec((H * D, dim), lambda b, h: (0, 0)),          # W_out (full, resident)
            pl.BlockSpec((1, dim), lambda b, h: (0, 0)),              # b_out
        ],
        out_specs=pl.BlockSpec((1, N, dim), lambda b, h: (b, 0, 0)),  # resident across h
        scratch_shapes=[pltpu.VMEM((H, N, D), jnp.float32),           # per-head z stash
                        pltpu.VMEM((N, dim), jnp.float32)],           # LayerNorm(x) cache
        compiler_params=pltpu.CompilerParams(
            dimension_semantics=("parallel", "arbitrary"),
            vmem_limit_bytes=32 * 1024 * 1024),
    )(x, lnw, lnb, w5, b5, wkt, wv1, wo, bo)


def init_params(key, dim, heads, dim_head):
    H, D = heads, dim_head
    ks = jax.random.split(key, 6)
    s = 0.2
    return dict(
        ln_w=jnp.ones((dim,), jnp.float32),
        ln_b=jnp.zeros((dim,), jnp.float32),
        W_abcde=s * jax.random.normal(ks[0], (dim, 5 * H * D), jnp.float32),
        b_abcde=s * jax.random.normal(ks[1], (5 * H * D,), jnp.float32),
        W_K=s * jax.random.normal(ks[2], (H, D, D, D), jnp.float32),
        W_V=s * jax.random.normal(ks[3], (H, D, D, D), jnp.float32),
        W_out=s * jax.random.normal(ks[4], (H * D, dim), jnp.float32),
        b_out=s * jax.random.normal(ks[5], (dim,), jnp.float32),
    )


def reference(x, params, *, heads, dim_head):
    """Pure-JAX f32 mirror of the PyTorch forward (for correctness check)."""
    H, D = heads, dim_head
    B, N, dim = x.shape
    hp = lax.Precision.HIGHEST

    mu = jnp.mean(x, axis=-1, keepdims=True)
    var = jnp.mean((x - mu) ** 2, axis=-1, keepdims=True)
    xn = (x - mu) / jnp.sqrt(var + 1e-5) * params['ln_w'] + params['ln_b']
    proj = jnp.einsum('nd,de->ne', xn.reshape(B * N, dim), params['W_abcde'],
                      precision=hp).reshape(B, N, -1) + params['b_abcde']
    a, b, c, d, e = jnp.split(proj, 5, axis=-1)
    rs = lambda t: t.reshape(B, N, H, D)
    a, b, c, d, e = map(rs, (a, b, c, d, e))

    step1 = jnp.einsum('brnk,nijk->bnrij', c, params['W_K'], precision=hp)
    step2 = jnp.einsum('bnrij,bqnj->bnriq', step1, b, precision=hp)
    attn = jnp.einsum('bnriq,bpni->bnpqr', step2, a, precision=hp)
    attn = attn.transpose(0, 1, 4, 2, 3).reshape(B, H, N, N * N) / D
    attn = jax.nn.softmax(attn, axis=-1)

    v = jnp.einsum('bpnx,bsny,nxyz->bpsnz', d, e, params['W_V'], precision=hp)
    v = v.transpose(0, 3, 4, 1, 2).reshape(B, H, D, N * N)
    z = jnp.einsum('bnql,bnhl->bqnh', attn, v, precision=hp)
    z = z.reshape(B, N, H * D)
    return jnp.einsum('bnk,kd->bnd', z, params['W_out'], precision=hp) + params['b_out']


if __name__ == "__main__":
    B, N, dim, H, D = 2, 8, 32, 4, 8   # batch, seq, dim, heads, dim_head

    key = jax.random.PRNGKey(0)
    kx, kp = jax.random.split(key)
    x = jax.random.normal(kx, (B, N, dim), jnp.float32)
    params = init_params(kp, dim, H, D)

    fn = jax.jit(functools.partial(trittention_cube, heads=H, dim_head=D))
    y = jax.block_until_ready(fn(x, params))

    # Default config uses bf16 MXU operands (perf), so the check against the
    # f32 reference uses a bf16-appropriate tolerance.  Running with
    # mxu_dtype=jnp.float32 matches the reference much more tightly.
    y_ref = reference(x, params, heads=H, dim_head=D)
    assert jnp.allclose(y, y_ref, atol=3e-1, rtol=5e-2), \
        f"max_err={float(jnp.max(jnp.abs(y - y_ref)))}"

    print("KERNEL_OK")
</pallas_src>

<mosaic_0001>
module attributes {stable_mosaic.version = 11 : i64} {
  func.func @trittention_kernel(%arg0: i32, %arg1: i32, %arg2: memref<1x8x32xf32, #tpu.memory_space<vmem>>, %arg3: memref<1x32xf32, #tpu.memory_space<vmem>>, %arg4: memref<1x32xf32, #tpu.memory_space<vmem>>, %arg5: memref<1x32x40xbf16, #tpu.memory_space<vmem>>, %arg6: memref<1x1x40xf32, #tpu.memory_space<vmem>>, %arg7: memref<1x8x64xbf16, #tpu.memory_space<vmem>>, %arg8: memref<1x8x64xbf16, #tpu.memory_space<vmem>>, %arg9: memref<32x32xbf16, #tpu.memory_space<vmem>>, %arg10: memref<1x32xf32, #tpu.memory_space<vmem>>, %arg11: memref<1x8x32xf32, #tpu.memory_space<vmem>>, %arg12: memref<4x8x8xf32, #tpu.memory_space<vmem>>, %arg13: memref<8x32xf32, #tpu.memory_space<vmem>>) attributes {dimension_semantics = [#tpu.dimension_semantics<parallel>, #tpu.dimension_semantics<arbitrary>], iteration_bounds = array<i64: 2, 4>, scalar_prefetch = 0 : i64, scratch_operands = 2 : i64, tpu.core_type = #tpu.core_type<tc>, window_params = [{transform_indices = @transform_0, window_bounds = array<i64: 1, 8, 32>}, {pipeline_mode = #tpu.pipeline_mode<synchronous>, transform_indices = @transform_1, window_bounds = array<i64: 1, 32>}, {pipeline_mode = #tpu.pipeline_mode<synchronous>, transform_indices = @transform_2, window_bounds = array<i64: 1, 32>}, {transform_indices = @transform_3, window_bounds = array<i64: 1, 32, 40>}, {transform_indices = @transform_4, window_bounds = array<i64: 1, 1, 40>}, {transform_indices = @transform_5, window_bounds = array<i64: 1, 8, 64>}, {transform_indices = @transform_6, window_bounds = array<i64: 1, 8, 64>}, {pipeline_mode = #tpu.pipeline_mode<synchronous>, transform_indices = @transform_7, window_bounds = array<i64: 32, 32>}, {pipeline_mode = #tpu.pipeline_mode<synchronous>, transform_indices = @transform_8, window_bounds = array<i64: 1, 32>}, {transform_indices = @transform_9, window_bounds = array<i64: 1, 8, 32>}]} {
    %c0_i32 = arith.constant 0 : i32
    %0 = arith.cmpi eq, %arg1, %c0_i32 : i32
    %1 = arith.extui %0 : i1 to i32
    %c0_i32_0 = arith.constant 0 : i32
    %2 = arith.cmpi ne, %1, %c0_i32_0 : i32
    scf.if %2 {
      %c0_25 = arith.constant 0 : index
      %c0_26 = arith.constant 0 : index
      %c0_27 = arith.constant 0 : index
      %67 = vector.load %arg2[%c0_25, %c0_26, %c0_27] : memref<1x8x32xf32, #tpu.memory_space<vmem>>, vector<1x8x32xf32>
      %68 = vector.shape_cast %67 : vector<1x8x32xf32> to vector<8x32xf32>
      %cst_28 = arith.constant dense<0.000000e+00> : vector<8xf32>
      %69 = vector.multi_reduction <add>, %68, %cst_28 [1] : vector<8x32xf32> to vector<8xf32>
      %70 = vector.shape_cast %69 : vector<8xf32> to vector<8x1xf32>
      %cst_29 = arith.constant 3.200000e+01 : f32
      %71 = vector.broadcast %cst_29 : f32 to vector<8x1xf32>
      %72 = arith.divf %70, %71 : vector<8x1xf32>
      %73 = vector.broadcast %72 : vector<8x1xf32> to vector<8x32xf32>
      %74 = arith.subf %68, %73 : vector<8x32xf32>
      %75 = arith.mulf %74, %74 : vector<8x32xf32>
      %cst_30 = arith.constant dense<0.000000e+00> : vector<8xf32>
      %76 = vector.multi_reduction <add>, %75, %cst_30 [1] : vector<8x32xf32> to vector<8xf32>
      %77 = vector.shape_cast %76 : vector<8xf32> to vector<8x1xf32>
      %cst_31 = arith.constant 3.200000e+01 : f32
      %78 = vector.broadcast %cst_31 : f32 to vector<8x1xf32>
      %79 = arith.divf %77, %78 : vector<8x1xf32>
      %80 = vector.broadcast %72 : vector<8x1xf32> to vector<8x32xf32>
      %81 = arith.subf %68, %80 : vector<8x32xf32>
      %cst_32 = arith.constant 9.99999974E-6 : f32
      %82 = vector.broadcast %cst_32 : f32 to vector<8x1xf32>
      %83 = arith.addf %79, %82 : vector<8x1xf32>
      %84 = math.rsqrt %83 : vector<8x1xf32>
      %85 = vector.broadcast %84 : vector<8x1xf32> to vector<8x32xf32>
      %86 = arith.mulf %81, %85 : vector<8x32xf32>
      %c0_33 = arith.constant 0 : index
      %c0_34 = arith.constant 0 : index
      %87 = vector.load %arg3[%c0_33, %c0_34] : memref<1x32xf32, #tpu.memory_space<vmem>>, vector<1x32xf32>
      %88 = vector.broadcast %87 : vector<1x32xf32> to vector<8x32xf32>
      %89 = arith.mulf %86, %88 : vector<8x32xf32>
      %c0_35 = arith.constant 0 : index
      %c0_36 = arith.constant 0 : index
      %90 = vector.load %arg4[%c0_35, %c0_36] : memref<1x32xf32, #tpu.memory_space<vmem>>, vector<1x32xf32>
      %91 = vector.broadcast %90 : vector<1x32xf32> to vector<8x32xf32>
      %92 = arith.addf %89, %91 : vector<8x32xf32>
      %c0_37 = arith.constant 0 : index
      %c0_38 = arith.constant 0 : index
      %93 = vector.load %arg13[%c0_37, %c0_38] : memref<8x32xf32, #tpu.memory_space<vmem>>, vector<8x32xf32>
      tpu.vector_store %arg13[%c0_37, %c0_38], %92 {strides = array<i32>} : memref<8x32xf32, #tpu.memory_space<vmem>>, vector<8x32xf32>,
    } else {
    }
    %c0 = arith.constant 0 : index
    %c0_1 = arith.constant 0 : index
    %3 = vector.load %arg13[%c0, %c0_1] : memref<8x32xf32, #tpu.memory_space<vmem>>, vector<8x32xf32>
    %4 = arith.truncf %3 : vector<8x32xf32> to vector<8x32xbf16>
    %c0_2 = arith.constant 0 : index
    %c0_3 = arith.constant 0 : index
    %c0_4 = arith.constant 0 : index
    %5 = vector.load %arg5[%c0_2, %c0_3, %c0_4] : memref<1x32x40xbf16, #tpu.memory_space<vmem>>, vector<1x32x40xbf16>
    %6 = vector.shape_cast %5 : vector<1x32x40xbf16> to vector<32x40xbf16>
    %cst = arith.constant dense<0.000000e+00> : vector<8x40xf32>
    %7 = tpu.matmul %4, %6, %cst {dimension_numbers = #tpu.dot_dimension_numbers<[1], [0], [0], [1], [0, 0, 1, 1], [], []>} : vector<8x32xbf16>, vector<32x40xbf16>, vector<8x40xf32> -> vector<8x40xf32>
    %c0_5 = arith.constant 0 : index
    %c0_6 = arith.constant 0 : index
    %c0_7 = arith.constant 0 : index
    %8 = vector.load %arg6[%c0_5, %c0_6, %c0_7] : memref<1x1x40xf32, #tpu.memory_space<vmem>>, vector<1x1x40xf32>
    %9 = vector.shape_cast %8 : vector<1x1x40xf32> to vector<1x40xf32>
    %10 = vector.broadcast %9 : vector<1x40xf32> to vector<8x40xf32>
    %11 = arith.addf %7, %10 : vector<8x40xf32>
    %12 = vector.extract_strided_slice %11 {offsets = [0, 0], sizes = [8, 8], strides = [1, 1]} : vector<8x40xf32> to vector<8x8xf32>
    %13 = arith.truncf %12 : vector<8x8xf32> to vector<8x8xbf16>
    %14 = vector.extract_strided_slice %11 {offsets = [0, 8], sizes = [8, 8], strides = [1, 1]} : vector<8x40xf32> to vector<8x8xf32>
    %15 = arith.truncf %14 : vector<8x8xf32> to vector<8x8xbf16>
    %16 = vector.extract_strided_slice %11 {offsets = [0, 16], sizes = [8, 8], strides = [1, 1]} : vector<8x40xf32> to vector<8x8xf32>
    %17 = arith.truncf %16 : vector<8x8xf32> to vector<8x8xbf16>
    %18 = vector.extract_strided_slice %11 {offsets = [0, 24], sizes = [8, 8], strides = [1, 1]} : vector<8x40xf32> to vector<8x8xf32>
    %19 = arith.truncf %18 : vector<8x8xf32> to vector<8x8xbf16>
    %20 = vector.extract_strided_slice %11 {offsets = [0, 32], sizes = [8, 8], strides = [1, 1]} : vector<8x40xf32> to vector<8x8xf32>
    %21 = arith.truncf %20 : vector<8x8xf32> to vector<8x8xbf16>
    %c0_8 = arith.constant 0 : index
    %c0_9 = arith.constant 0 : index
    %c0_10 = arith.constant 0 : index
    %22 = vector.load %arg7[%c0_8, %c0_9, %c0_10] : memref<1x8x64xbf16, #tpu.memory_space<vmem>>, vector<1x8x64xbf16>
    %23 = vector.shape_cast %22 : vector<1x8x64xbf16> to vector<8x64xbf16>
    %cst_11 = arith.constant dense<0.000000e+00> : vector<8x64xf32>
    %24 = tpu.matmul %17, %23, %cst_11 {dimension_numbers = #tpu.dot_dimension_numbers<[1], [0], [0], [1], [0, 0, 1, 1], [], []>} : vector<8x8xbf16>, vector<8x64xbf16>, vector<8x64xf32> -> vector<8x64xf32>
    %25 = vector.shape_cast %24 : vector<8x64xf32> to vector<8x8x8xf32>
    %26 = arith.truncf %25 : vector<8x8x8xf32> to vector<8x8x8xbf16>
    %27 = vector.shape_cast %15 : vector<8x8xbf16> to vector<1x8x8xbf16>
    %28 = vector.shape_cast %27 : vector<1x8x8xbf16> to vector<1x8x8xbf16>
    %29 = vector.broadcast %28 : vector<1x8x8xbf16> to vector<8x8x8xbf16>
    %cst_12 = arith.constant dense<0.000000e+00> : vector<8x8x8xf32>
    %30 = tpu.matmul %26, %29, %cst_12 {dimension_numbers = #tpu.dot_dimension_numbers<[2], [2], [1], [1], [0, 0, 0, 1, 1, 1], [0], [0]>} : vector<8x8x8xbf16>, vector<8x8x8xbf16>, vector<8x8x8xf32> -> vector<8x8x8xf32>
    %31 = vector.shape_cast %13 : vector<8x8xbf16> to vector<1x8x8xbf16>
    %32 = vector.shape_cast %31 : vector<1x8x8xbf16> to vector<1x8x8xbf16>
    %33 = vector.broadcast %32 : vector<1x8x8xbf16> to vector<8x8x8xbf16>
    %34 = arith.truncf %30 : vector<8x8x8xf32> to vector<8x8x8xbf16>
    %cst_13 = arith.constant dense<0.000000e+00> : vector<8x8x8xf32>
    %35 = tpu.matmul %33, %34, %cst_13 {dimension_numbers = #tpu.dot_dimension_numbers<[2], [1], [1], [2], [0, 0, 0, 1, 1, 2], [0], [0]>} : vector<8x8x8xbf16>, vector<8x8x8xbf16>, vector<8x8x8xf32> -> vector<8x8x8xf32>
    %36 = vector.shape_cast %35 : vector<8x8x8xf32> to vector<8x64xf32>
    %cst_14 = arith.constant dense<0xFF800000> : vector<8xf32>
    %37 = vector.multi_reduction <maximumf>, %36, %cst_14 [1] : vector<8x64xf32> to vector<8xf32>
    %38 = vector.shape_cast %37 : vector<8xf32> to vector<8x1xf32>
    %39 = vector.broadcast %38 : vector<8x1xf32> to vector<8x64xf32>
    %40 = arith.subf %36, %39 : vector<8x64xf32>
    %41 = math.exp %40 : vector<8x64xf32>
    %cst_15 = arith.constant dense<0.000000e+00> : vector<8xf32>
    %42 = vector.multi_reduction <add>, %41, %cst_15 [1] : vector<8x64xf32> to vector<8xf32>
    %43 = vector.shape_cast %42 : vector<8xf32> to vector<8x1xf32>
    %44 = tpu.reciprocal %43 {approx = true} : vector<8x1xf32> -> vector<8x1xf32>
    %45 = vector.broadcast %44 : vector<8x1xf32> to vector<8x64xf32>
    %46 = arith.mulf %41, %45 : vector<8x64xf32>
    %c0_16 = arith.constant 0 : index
    %c0_17 = arith.constant 0 : index
    %c0_18 = arith.constant 0 : index
    %47 = vector.load %arg8[%c0_16, %c0_17, %c0_18] : memref<1x8x64xbf16, #tpu.memory_space<vmem>>, vector<1x8x64xbf16>
    %48 = vector.shape_cast %47 : vector<1x8x64xbf16> to vector<8x64xbf16>
    %cst_19 = arith.constant dense<0.000000e+00> : vector<8x64xf32>
    %49 = tpu.matmul %19, %48, %cst_19 {dimension_numbers = #tpu.dot_dimension_numbers<[1], [0], [0], [1], [0, 0, 1, 1], [], []>} : vector<8x8xbf16>, vector<8x64xbf16>, vector<8x64xf32> -> vector<8x64xf32>
    %50 = vector.shape_cast %49 : vector<8x64xf32> to vector<8x8x8xf32>
    %51 = arith.truncf %50 : vector<8x8x8xf32> to vector<8x8x8xbf16>
    %52 = vector.shape_cast %21 : vector<8x8xbf16> to vector<1x8x8xbf16>
    %53 = vector.shape_cast %52 : vector<1x8x8xbf16> to vector<1x8x8xbf16>
    %54 = vector.broadcast %53 : vector<1x8x8xbf16> to vector<8x8x8xbf16>
    %cst_20 = arith.constant dense<0.000000e+00> : vector<8x8x8xf32>
    %55 = tpu.matmul %54, %51, %cst_20 {dimension_numbers = #tpu.dot_dimension_numbers<[2], [1], [1], [2], [0, 0, 0, 1, 1, 2], [0], [0]>} : vector<8x8x8xbf16>, vector<8x8x8xbf16>, vector<8x8x8xf32> -> vector<8x8x8xf32>
    %56 = vector.shape_cast %55 : vector<8x8x8xf32> to vector<64x8xf32>
    %57 = arith.truncf %56 : vector<64x8xf32> to vector<64x8xbf16>
    %58 = arith.truncf %46 : vector<8x64xf32> to vector<8x64xbf16>
    %cst_21 = arith.constant dense<0.000000e+00> : vector<8x8xf32>
    %59 = tpu.matmul %58, %57, %cst_21 {dimension_numbers = #tpu.dot_dimension_numbers<[1], [0], [0], [1], [0, 0, 1, 1], [], []>} : vector<8x64xbf16>, vector<64x8xbf16>, vector<8x8xf32> -> vector<8x8xf32>
    %60 = arith.index_cast %arg1 : i32 to index
    %c0_22 = arith.constant 0 : index
    %c0_23 = arith.constant 0 : index
    %61 = vector.load %arg12[%60, %c0_22, %c0_23] : memref<4x8x8xf32, #tpu.memory_space<vmem>>, vector<1x8x8xf32>
    %62 = vector.shape_cast %61 : vector<1x8x8xf32> to vector<8x8xf32>
    %63 = vector.shape_cast %59 : vector<8x8xf32> to vector<1x8x8xf32>
    tpu.vector_store %arg12[%60, %c0_22, %c0_23], %63 {strides = array<i32>} : memref<4x8x8xf32, #tpu.memory_space<vmem>>, vector<1x8x8xf32>,
    %c3_i32 = arith.constant 3 : i32
    %64 = arith.cmpi eq, %arg1, %c3_i32 : i32
    %65 = arith.extui %64 : i1 to i32
    %c0_i32_24 = arith.constant 0 : i32
    %66 = arith.cmpi ne, %65, %c0_i32_24 : i32
    scf.if %66 {
      %c0_25 = arith.constant 0 : index
      %c0_26 = arith.constant 0 : index
      %c0_27 = arith.constant 0 : index
      %67 = vector.load %arg12[%c0_25, %c0_26, %c0_27] : memref<4x8x8xf32, #tpu.memory_space<vmem>>, vector<1x8x8xf32>
      %68 = vector.shape_cast %67 : vector<1x8x8xf32> to vector<8x8xf32>
      %c1 = arith.constant 1 : index
      %c0_28 = arith.constant 0 : index
      %c0_29 = arith.constant 0 : index
      %69 = vector.load %arg12[%c1, %c0_28, %c0_29] : memref<4x8x8xf32, #tpu.memory_space<vmem>>, vector<1x8x8xf32>
      %70 = vector.shape_cast %69 : vector<1x8x8xf32> to vector<8x8xf32>
      %c2 = arith.constant 2 : index
      %c0_30 = arith.constant 0 : index
      %c0_31 = arith.constant 0 : index
      %71 = vector.load %arg12[%c2, %c0_30, %c0_31] : memref<4x8x8xf32, #tpu.memory_space<vmem>>, vector<1x8x8xf32>
      %72 = vector.shape_cast %71 : vector<1x8x8xf32> to vector<8x8xf32>
      %c3 = arith.constant 3 : index
      %c0_32 = arith.constant 0 : index
      %c0_33 = arith.constant 0 : index
      %73 = vector.load %arg12[%c3, %c0_32, %c0_33] : memref<4x8x8xf32, #tpu.memory_space<vmem>>, vector<1x8x8xf32>
      %74 = vector.shape_cast %73 : vector<1x8x8xf32> to vector<8x8xf32>
      %75 = tpu.concatenate %68, %70, %72, %74 in 1 : vector<8x8xf32>, vector<8x8xf32>, vector<8x8xf32>, vector<8x8xf32> -> vector<8x32xf32>
      %76 = arith.truncf %75 : vector<8x32xf32> to vector<8x32xbf16>
      %c0_34 = arith.constant 0 : index
      %c0_35 = arith.constant 0 : index
      %77 = vector.load %arg9[%c0_34, %c0_35] : memref<32x32xbf16, #tpu.memory_space<vmem>>, vector<32x32xbf16>
      %cst_36 = arith.constant dense<0.000000e+00> : vector<8x32xf32>
      %78 = tpu.matmul %76, %77, %cst_36 {dimension_numbers = #tpu.dot_dimension_numbers<[1], [0], [0], [1], [0, 0, 1, 1], [], []>} : vector<8x32xbf16>, vector<32x32xbf16>, vector<8x32xf32> -> vector<8x32xf32>
      %c0_37 = arith.constant 0 : index
      %c0_38 = arith.constant 0 : index
      %79 = vector.load %arg10[%c0_37, %c0_38] : memref<1x32xf32, #tpu.memory_space<vmem>>, vector<1x32xf32>
      %80 = vector.broadcast %79 : vector<1x32xf32> to vector<8x32xf32>
      %81 = arith.addf %78, %80 : vector<8x32xf32>
      %c0_39 = arith.constant 0 : index
      %c0_40 = arith.constant 0 : index
      %c0_41 = arith.constant 0 : index
      %82 = vector.load %arg11[%c0_39, %c0_40, %c0_41] : memref<1x8x32xf32, #tpu.memory_space<vmem>>, vector<1x8x32xf32>
      %83 = vector.shape_cast %82 : vector<1x8x32xf32> to vector<8x32xf32>
      %84 = vector.shape_cast %81 : vector<8x32xf32> to vector<1x8x32xf32>
      tpu.vector_store %arg11[%c0_39, %c0_40, %c0_41], %84 {strides = array<i32>} : memref<1x8x32xf32, #tpu.memory_space<vmem>>, vector<1x8x32xf32>,
    } else {
    }
    return
  }
  func.func @transform_0(%arg0: i32, %arg1: i32) -> (i32, i32, i32) {
    %c0_i32 = arith.constant 0 : i32
    %c0_i32_0 = arith.constant 0 : i32
    %c0_i32_1 = arith.constant 0 : i32
    return %arg0, %c0_i32, %c0_i32_0 : i32, i32, i32
  }
  func.func @transform_1(%arg0: i32, %arg1: i32) -> (i32, i32) {
    %c0_i32 = arith.constant 0 : i32
    %c0_i32_0 = arith.constant 0 : i32
    %c0_i32_1 = arith.constant 0 : i32
    return %c0_i32, %c0_i32_0 : i32, i32
  }
  func.func @transform_2(%arg0: i32, %arg1: i32) -> (i32, i32) {
    %c0_i32 = arith.constant 0 : i32
    %c0_i32_0 = arith.constant 0 : i32
    %c0_i32_1 = arith.constant 0 : i32
    return %c0_i32, %c0_i32_0 : i32, i32
  }
  func.func @transform_3(%arg0: i32, %arg1: i32) -> (i32, i32, i32) {
    %c0_i32 = arith.constant 0 : i32
    %c0_i32_0 = arith.constant 0 : i32
    %c0_i32_1 = arith.constant 0 : i32
    return %arg1, %c0_i32, %c0_i32_0 : i32, i32, i32
  }
  func.func @transform_4(%arg0: i32, %arg1: i32) -> (i32, i32, i32) {
    %c0_i32 = arith.constant 0 : i32
    %c0_i32_0 = arith.constant 0 : i32
    %c0_i32_1 = arith.constant 0 : i32
    return %arg1, %c0_i32, %c0_i32_0 : i32, i32, i32
  }
  func.func @transform_5(%arg0: i32, %arg1: i32) -> (i32, i32, i32) {
    %c0_i32 = arith.constant 0 : i32
    %c0_i32_0 = arith.constant 0 : i32
    %c0_i32_1 = arith.constant 0 : i32
    return %arg1, %c0_i32, %c0_i32_0 : i32, i32, i32
  }
  func.func @transform_6(%arg0: i32, %arg1: i32) -> (i32, i32, i32) {
    %c0_i32 = arith.constant 0 : i32
    %c0_i32_0 = arith.constant 0 : i32
    %c0_i32_1 = arith.constant 0 : i32
    return %arg1, %c0_i32, %c0_i32_0 : i32, i32, i32
  }
  func.func @transform_7(%arg0: i32, %arg1: i32) -> (i32, i32) {
    %c0_i32 = arith.constant 0 : i32
    %c0_i32_0 = arith.constant 0 : i32
    %c0_i32_1 = arith.constant 0 : i32
    return %c0_i32, %c0_i32_0 : i32, i32
  }
  func.func @transform_8(%arg0: i32, %arg1: i32) -> (i32, i32) {
    %c0_i32 = arith.constant 0 : i32
    %c0_i32_0 = arith.constant 0 : i32
    %c0_i32_1 = arith.constant 0 : i32
    return %c0_i32, %c0_i32_0 : i32, i32
  }
  func.func @transform_9(%arg0: i32, %arg1: i32) -> (i32, i32, i32) {
    %c0_i32 = arith.constant 0 : i32
    %c0_i32_0 = arith.constant 0 : i32
    %c0_i32_1 = arith.constant 0 : i32
    return %arg0, %c0_i32, %c0_i32_0 : i32, i32, i32
  }
}

</mosaic_0001>

<llo_original>
// kernel: trittention_cube.1
$region0: #{trittention_cube.1}
  #allocation0 [shape = 'u32[]', space=smem, size = 0x4, offset = 0x4, fixed_abs, tag = 'smem constant byte address 0x4 - core index']
  #allocation1 [shape = 'u32[144,128]{1,0:T(1,128)}', space=vmem, size = 0x12000, scoped, tag = 'internal scratch']
  #allocation2 [shape = 'f32[4,8,8]{2,1,0:T(8,128)}', space=vmem, size = 0x4000, scoped, tag = 'scratch operand']
  #allocation3 [shape = 'f32[8,32]{1,0:T(8,128)}', space=vmem, size = 0x1000, scoped, tag = 'scratch operand']
  %s0 = inlined_call_operand.vmem [shape: f32[2,8,32], index: 0, kind: input, shape index: {}]
  %s1 = inlined_call_operand.vmem [shape: f32[1,32], index: 1, kind: input, shape index: {}]
  %s2 = inlined_call_operand.vmem [shape: f32[1,32], index: 2, kind: input, shape index: {}]
  %s3 = inlined_call_operand.vmem [shape: bf16[4,32,40], index: 3, kind: input, shape index: {}]
  %s4 = inlined_call_operand.vmem [shape: f32[4,1,40], index: 4, kind: input, shape index: {}]
  %s5 = inlined_call_operand.vmem [shape: bf16[4,8,64], index: 5, kind: input, shape index: {}]
  %s6 = inlined_call_operand.vmem [shape: bf16[4,8,64], index: 6, kind: input, shape index: {}]
  %s7 = inlined_call_operand.vmem [shape: bf16[32,32], index: 7, kind: input, shape index: {}]
  %s8 = inlined_call_operand.vmem [shape: f32[1,32], index: 8, kind: input, shape index: {}]
  %s9 = inlined_call_operand.hbm [shape: f32[2,8,32], index: 9, kind: output, shape index: {}]
  %s10 = sld [smem:[#allocation0]]
  $region77: #{trittention_cube.1} parent=0
    _
  %s12 = ssub.s32 1, %s10
  %s13 = scalar_select 0, %s12, %s10
  $region1: #{trittention_cube.1} parent=0
    #allocation4 [shape = 'u8[8192]{0}', space=vmem, size = 0x2000, scoped, tag = 'output window, operand 0']
    #allocation5 [shape = 's32[2]{0}', space=sflag, size = 0x8, scoped, tag = 'scoped memory for trittention_cube.1']
    %14 = vsyncpa [#allocation5], 0
    %s15 = scalar_lea.sflag [#allocation5], 1
    %16 = vsyncpa %s15, 0
    loop: start=0, step=1, limit=10
    $region2: #{trittention_cube.1} parent=1 // loop_pre_header
      _
    $region3: #{trittention_cube.1} parent=1 // loop_header
      %s18 = sphi 0, %s22
      %p19 = scmp.ge.s32.totalorder %s18, 10
      %s25 = sphi 0, %s37
      %s26 = sphi 0, %s33
      %s27 = sphi 0, %s25
      %s28 = sphi 0, %s26
      %s29 = sphi 0, %s27
      %s30 = sphi 0, %s28
      %s40 = sphi 0, %s42
      %s43 = sphi 0, %s40
      %s44 = sphi 0, %s43
      %s60 = sphi 0, %s44
      %s64 = sphi 0, %s64
      %s66 = sphi 0, %s64
      %s67 = sphi 0, %s66
      %s81 = sphi 0, %s67
      %s85 = sphi 0, %s85
      %s87 = sphi 0, %s85
      %s88 = sphi 0, %s87
      %s102 = sphi 0, %s88
      %s108 = sphi 0, %s110
      %s111 = sphi 0, %s108
      %s112 = sphi 0, %s111
      %s128 = sphi 0, %s112
      %s134 = sphi 0, %s136
      %s137 = sphi 0, %s134
      %s138 = sphi 0, %s137
      %s154 = sphi 0, %s138
      %s160 = sphi 0, %s162
      %s163 = sphi 0, %s160
      %s164 = sphi 0, %s163
      %s180 = sphi 0, %s164
      %s186 = sphi 0, %s188
      %s189 = sphi 0, %s186
      %s190 = sphi 0, %s189
      %s206 = sphi 0, %s190
      %s210 = sphi 0, %s210
      %s212 = sphi 0, %s210
      %s213 = sphi 0, %s212
      %s227 = sphi 0, %s213
      %s231 = sphi 0, %s231
      %s233 = sphi 0, %s231
      %s234 = sphi 0, %s233
      %s248 = sphi 0, %s234
      %s254 = sphi 0, %s256
      %s257 = sphi 0, %s254
      %s258 = sphi 0, %s257
      %s274 = sphi 0, %s258
    $region4: #{trittention_cube.1} parent=1 // loop_header_branch
      %21 = sbr.rel (%p19) target = $region8
    $region5: #{trittention_cube.1} parent=1 // loop_body
      %s23 = ssub.s32 %s18, 1
      %s24 = ssub.s32 %s18, 2
      %s31 = sadd.s32 1, %s26
      %p32 = scmp.ge.s32.totalorder %s31, 4
      %s33 = scalar_select %p32, 0, %s31
      %s34 = sadd.s32 1, %s25
      %s35 = scalar_select %p32, %s34, %s25
      %p36 = scmp.ge.s32.totalorder %s35, 2
      %s37 = scalar_select %p36, 0, %s35
      %s38 = ssub.s32 %s25, %s37
      %p39 = scmp.eq.s32.totalorder %s38, 0
      %s41 = sadd.s32 %s40, 1
      %s42 = scalar_select %p39, %s40, %s41
      %p45 = pneg %p39
      %p46 = scmp.eq.s32.totalorder %s18, 7
      %p47 = por %p45, %p46
      %p48 = scmp.ne.s32.totalorder %s40, %s43
      %p49 = scmp.eq.s32.totalorder %s18, 0
      %p50 = por %p48, %p49
      %p51 = scmp.ne.s32.totalorder %s40, %s43
      %p52 = scmp.eq.s32.totalorder %s23, 7
      %p53 = por %p51, %p52
      %p54 = scmp.ne.s32.totalorder %s43, %s44
      %p55 = scmp.eq.s32.totalorder %s23, 0
      %p56 = por %p54, %p55
      %p57 = scmp.ne.s32.totalorder %s43, %s44
      %p58 = scmp.eq.s32.totalorder %s24, 7
      %p59 = por %p57, %p58
      %p61 = scmp.ne.s32.totalorder %s44, %s60
      %p62 = scmp.eq.s32.totalorder %s24, 0
      %p63 = por %p61, %p62
      %s65 = sadd.s32 %s64, 1
      %p68 = scmp.eq.s32.totalorder %s18, 7
      %p69 = scmp.ne.s32.totalorder %s64, %s66
      %p70 = scmp.eq.s32.totalorder %s18, 0
      %p71 = por %p69, %p70
      %p72 = scmp.ne.s32.totalorder %s64, %s66
      %p73 = scmp.eq.s32.totalorder %s23, 7
      %p74 = por %p72, %p73
      %p75 = scmp.ne.s32.totalorder %s66, %s67
      %p76 = scmp.eq.s32.totalorder %s23, 0
      %p77 = por %p75, %p76
      %p78 = scmp.ne.s32.totalorder %s66, %s67
      %p79 = scmp.eq.s32.totalorder %s24, 7
      %p80 = por %p78, %p79
      %p82 = scmp.ne.s32.totalorder %s67, %s81
      %p83 = scmp.eq.s32.totalorder %s24, 0
      %p84 = por %p82, %p83
      %s86 = sadd.s32 %s85, 1
      %p89 = scmp.eq.s32.totalorder %s18, 7
      %p90 = scmp.ne.s32.totalorder %s85, %s87
      %p91 = scmp.eq.s32.totalorder %s18, 0
      %p92 = por %p90, %p91
      %p93 = scmp.ne.s32.totalorder %s85, %s87
      %p94 = scmp.eq.s32.totalorder %s23, 7
      %p95 = por %p93, %p94
      %p96 = scmp.ne.s32.totalorder %s87, %s88
      %p97 = scmp.eq.s32.totalorder %s23, 0
      %p98 = por %p96, %p97
      %p99 = scmp.ne.s32.totalorder %s87, %s88
      %p100 = scmp.eq.s32.totalorder %s24, 7
      %p101 = por %p99, %p100
      %p103 = scmp.ne.s32.totalorder %s88, %s102
      %p104 = scmp.eq.s32.totalorder %s24, 0
      %p105 = por %p103, %p104
      %s106 = ssub.s32 %s26, %s33
      %p107 = scmp.eq.s32.totalorder %s106, 0
      %s109 = sadd.s32 %s108, 1
      %s110 = scalar_select %p107, %s108, %s109
      %p113 = pneg %p107
      %p114 = scmp.eq.s32.totalorder %s18, 7
      %p115 = por %p113, %p114
      %p116 = scmp.ne.s32.totalorder %s108, %s111
      %p117 = scmp.eq.s32.totalorder %s18, 0
      %p118 = por %p116, %p117
      %p119 = scmp.ne.s32.totalorder %s108, %s111
      %p120 = scmp.eq.s32.totalorder %s23, 7
      %p121 = por %p119, %p120
      %p122 = scmp.ne.s32.totalorder %s111, %s112
      %p123 = scmp.eq.s32.totalorder %s23, 0
      %p124 = por %p122, %p123
      %p125 = scmp.ne.s32.totalorder %s111, %s112
      %p126 = scmp.eq.s32.totalorder %s24, 7
      %p127 = por %p125, %p126
      %p129 = scmp.ne.s32.totalorder %s112, %s128
      %p130 = scmp.eq.s32.totalorder %s24, 0
      %p131 = por %p129, %p130
      %s132 = ssub.s32 %s26, %s33
      %p133 = scmp.eq.s32.totalorder %s132, 0
      %s135 = sadd.s32 %s134, 1
      %s136 = scalar_select %p133, %s134, %s135
      %p139 = pneg %p133
      %p140 = scmp.eq.s32.totalorder %s18, 7
      %p141 = por %p139, %p140
      %p142 = scmp.ne.s32.totalorder %s134, %s137
      %p143 = scmp.eq.s32.totalorder %s18, 0
      %p144 = por %p142, %p143
      %p145 = scmp.ne.s32.totalorder %s134, %s137
      %p146 = scmp.eq.s32.totalorder %s23, 7
      %p147 = por %p145, %p146
      %p148 = scmp.ne.s32.totalorder %s137, %s138
      %p149 = scmp.eq.s32.totalorder %s23, 0
      %p150 = por %p148, %p149
      %p151 = scmp.ne.s32.totalorder %s137, %s138
      %p152 = scmp.eq.s32.totalorder %s24, 7
      %p153 = por %p151, %p152
      %p155 = scmp.ne.s32.totalorder %s138, %s154
      %p156 = scmp.eq.s32.totalorder %s24, 0
      %p157 = por %p155, %p156
      %s158 = ssub.s32 %s26, %s33
      %p159 = scmp.eq.s32.totalorder %s158, 0
      %s161 = sadd.s32 %s160, 1
      %s162 = scalar_select %p159, %s160, %s161
      %p165 = pneg %p159
      %p166 = scmp.eq.s32.totalorder %s18, 7
      %p167 = por %p165, %p166
      %p168 = scmp.ne.s32.totalorder %s160, %s163
      %p169 = scmp.eq.s32.totalorder %s18, 0
      %p170 = por %p168, %p169
      %p171 = scmp.ne.s32.totalorder %s160, %s163
      %p172 = scmp.eq.s32.totalorder %s23, 7
      %p173 = por %p171, %p172
      %p174 = scmp.ne.s32.totalorder %s163, %s164
      %p175 = scmp.eq.s32.totalorder %s23, 0
      %p176 = por %p174, %p175
      %p177 = scmp.ne.s32.totalorder %s163, %s164
      %p178 = scmp.eq.s32.totalorder %s24, 7
      %p179 = por %p177, %p178
      %p181 = scmp.ne.s32.totalorder %s164, %s180
      %p182 = scmp.eq.s32.totalorder %s24, 0
      %p183 = por %p181, %p182
      %s184 = ssub.s32 %s26, %s33
      %p185 = scmp.eq.s32.totalorder %s184, 0
      %s187 = sadd.s32 %s186, 1
      %s188 = scalar_select %p185, %s186, %s187
      %p191 = pneg %p185
      %p192 = scmp.eq.s32.totalorder %s18, 7
      %p193 = por %p191, %p192
      %p194 = scmp.ne.s32.totalorder %s186, %s189
      %p195 = scmp.eq.s32.totalorder %s18, 0
      %p196 = por %p194, %p195
      %p197 = scmp.ne.s32.totalorder %s186, %s189
      %p198 = scmp.eq.s32.totalorder %s23, 7
      %p199 = por %p197, %p198
      %p200 = scmp.ne.s32.totalorder %s189, %s190
      %p201 = scmp.eq.s32.totalorder %s23, 0
      %p202 = por %p200, %p201
      %p203 = scmp.ne.s32.totalorder %s189, %s190
      %p204 = scmp.eq.s32.totalorder %s24, 7
      %p205 = por %p203, %p204
      %p207 = scmp.ne.s32.totalorder %s190, %s206
      %p208 = scmp.eq.s32.totalorder %s24, 0
      %p209 = por %p207, %p208
      %s211 = sadd.s32 %s210, 1
      %p214 = scmp.eq.s32.totalorder %s18, 7
      %p215 = scmp.ne.s32.totalorder %s210, %s212
      %p216 = scmp.eq.s32.totalorder %s18, 0
      %p217 = por %p215, %p216
      %p218 = scmp.ne.s32.totalorder %s210, %s212
      %p219 = scmp.eq.s32.totalorder %s23, 7
      %p220 = por %p218, %p219
      %p221 = scmp.ne.s32.totalorder %s212, %s213
      %p222 = scmp.eq.s32.totalorder %s23, 0
      %p223 = por %p221, %p222
      %p224 = scmp.ne.s32.totalorder %s212, %s213
      %p225 = scmp.eq.s32.totalorder %s24, 7
      %p226 = por %p224, %p225
      %p228 = scmp.ne.s32.totalorder %s213, %s227
      %p229 = scmp.eq.s32.totalorder %s24, 0
      %p230 = por %p228, %p229
      %s232 = sadd.s32 %s231, 1
      %p235 = scmp.eq.s32.totalorder %s18, 7
      %p236 = scmp.ne.s32.totalorder %s231, %s233
      %p237 = scmp.eq.s32.totalorder %s18, 0
      %p238 = por %p236, %p237
      %p239 = scmp.ne.s32.totalorder %s231, %s233
      %p240 = scmp.eq.s32.totalorder %s23, 7
      %p241 = por %p239, %p240
      %p242 = scmp.ne.s32.totalorder %s233, %s234
      %p243 = scmp.eq.s32.totalorder %s23, 0
      %p244 = por %p242, %p243
      %p245 = scmp.ne.s32.totalorder %s233, %s234
      %p246 = scmp.eq.s32.totalorder %s24, 7
      %p247 = por %p245, %p246
      %p249 = scmp.ne.s32.totalorder %s234, %s248
      %p250 = scmp.eq.s32.totalorder %s24, 0
      %p251 = por %p249, %p250
      %s252 = ssub.s32 %s25, %s37
      %p253 = scmp.eq.s32.totalorder %s252, 0
      %s255 = sadd.s32 %s254, 1
      %s256 = scalar_select %p253, %s254, %s255
      %p259 = pneg %p253
      %p260 = scmp.eq.s32.totalorder %s18, 7
      %p261 = por %p259, %p260
      %p262 = scmp.ne.s32.totalorder %s254, %s257
      %p263 = scmp.eq.s32.totalorder %s18, 0
      %p264 = por %p262, %p263
      %p265 = scmp.ne.s32.totalorder %s254, %s257
      %p266 = scmp.eq.s32.totalorder %s23, 7
      %p267 = por %p265, %p266
      %p268 = scmp.ne.s32.totalorder %s257, %s258
      %p269 = scmp.eq.s32.totalorder %s23, 0
      %p270 = por %p268, %p269
      %p271 = scmp.ne.s32.totalorder %s257, %s258
      %p272 = scmp.eq.s32.totalorder %s24, 7
      %p273 = por %p271, %p272
      %p275 = scmp.ne.s32.totalorder %s258, %s274
      %p276 = scmp.eq.s32.totalorder %s24, 0
      %p277 = por %p275, %p276
      %p278 = scmp.le.s32.totalorder 1, %s18
      %p279 = scmp.lt.s32.totalorder %s18, 9
      %p280 = pnand %p278, %p279
      %p281 = pneg %p280
      // Predicated region
      $region9: #{trittention_cube.1} parent=5 // pred_check
        _
      $region10: #{trittention_cube.1} parent=5 // pred_check_branch
        %283 = sbr.rel (%p280) target = $region12
      $region11: #{trittention_cube.1} parent=5 // pred_region
        %s284 = ssub.s32 %s18, 1
        // Predicated region
        $region13: #{trittention_cube.1} parent=11 // pred_check
          %p285 = pneg %p77
        $region14: #{trittention_cube.1} parent=11 // pred_check_branch
          %287 = sbr.rel (%p285) target = $region16
        $region15: #{trittention_cube.1} parent=11 // pred_region
          _
        $region16: #{trittention_cube.1} parent=11 // pred_fallthru
          _
        // Predicated region
        $region17: #{trittention_cube.1} parent=11 // pred_check
          %p288 = pneg %p98
        $region18: #{trittention_cube.1} parent=11 // pred_check_branch
          %290 = sbr.rel (%p288) target = $region20
        $region19: #{trittention_cube.1} parent=11 // pred_region
          _
        $region20: #{trittention_cube.1} parent=11 // pred_fallthru
          _
        // Predicated region
        $region21: #{trittention_cube.1} parent=11 // pred_check
          %p291 = pneg %p223
        $region22: #{trittention_cube.1} parent=11 // pred_check_branch
          %293 = sbr.rel (%p291) target = $region24
        $region23: #{trittention_cube.1} parent=11 // pred_region
          _
        $region24: #{trittention_cube.1} parent=11 // pred_fallthru
          _
        // Predicated region
        $region25: #{trittention_cube.1} parent=11 // pred_check
          %p294 = pneg %p244
        $region26: #{trittention_cube.1} parent=11 // pred_check_branch
          %296 = sbr.rel (%p294) target = $region28
        $region27: #{trittention_cube.1} parent=11 // pred_region
          _
        $region28: #{trittention_cube.1} parent=11 // pred_fallthru
          _
      $region12: #{trittention_cube.1} parent=5 // pred_fallthru
        _
      %p297 = scmp.lt.s32.totalorder %s18, 8
      // Predicated region
      $region29: #{trittention_cube.1} parent=5 // pred_check
        %p298 = pneg %p297
      $region30: #{trittention_cube.1} parent=5 // pred_check_branch
        %300 = sbr.rel (%p298) target = $region32
      $region31: #{trittention_cube.1} parent=5 // pred_region
        // Predicated region
        $region33: #{trittention_cube.1} parent=31 // pred_check
          %p301 = pneg %p50
        $region34: #{trittention_cube.1} parent=31 // pred_check_branch
          %303 = sbr.rel (%p301) target = $region36
        $region35: #{trittention_cube.1} parent=31 // pred_region
          %p304 = scmp.lt.s32.totalorder %s25, 1
          %s305 = scalar_select %p304, %s25, 1
          %s306 = smul.addr %s305, 8
          %s307 = scalar_lea.vmem %s0, %s306
        $region36: #{trittention_cube.1} parent=31 // pred_fallthru
          _
        // Predicated region
        $region37: #{trittention_cube.1} parent=31 // pred_check
          %p308 = pneg %p118
        $region38: #{trittention_cube.1} parent=31 // pred_check_branch
          %310 = sbr.rel (%p308) target = $region40
        $region39: #{trittention_cube.1} parent=31 // pred_region
          %p311 = scmp.lt.s32.totalorder %s26, 3
          %s312 = scalar_select %p311, %s26, 3
          %s313 = smul.addr %s312, 4
          %s314 = smul.addr %s313, 4
          %s315 = scalar_lea.vmem %s3, %s314
        $region40: #{trittention_cube.1} parent=31 // pred_fallthru
          _
        // Predicated region
        $region41: #{trittention_cube.1} parent=31 // pred_check
          %p316 = pneg %p144
        $region42: #{trittention_cube.1} parent=31 // pred_check_branch
          %318 = sbr.rel (%p316) target = $region44
        $region43: #{trittention_cube.1} parent=31 // pred_region
          %p319 = scmp.lt.s32.totalorder %s26, 3
          %s320 = scalar_select %p319, %s26, 3
          %s321 = scalar_lea.vmem %s4, %s320
        $region44: #{trittention_cube.1} parent=31 // pred_fallthru
          _
        // Predicated region
        $region45: #{trittention_cube.1} parent=31 // pred_check
          %p322 = pneg %p170
        $region46: #{trittention_cube.1} parent=31 // pred_check_branch
          %324 = sbr.rel (%p322) target = $region48
        $region47: #{trittention_cube.1} parent=31 // pred_region
          %p325 = scmp.lt.s32.totalorder %s26, 3
          %s326 = scalar_select %p325, %s26, 3
          %s327 = smul.addr %s326, 4
          %s328 = scalar_lea.vmem %s5, %s327
        $region48: #{trittention_cube.1} parent=31 // pred_fallthru
          _
        // Predicated region
        $region49: #{trittention_cube.1} parent=31 // pred_check
          %p329 = pneg %p196
        $region50: #{trittention_cube.1} parent=31 // pred_check_branch
          %331 = sbr.rel (%p329) target = $region52
        $region51: #{trittention_cube.1} parent=31 // pred_region
          %p332 = scmp.lt.s32.totalorder %s26, 3
          %s333 = scalar_select %p332, %s26, 3
          %s334 = smul.addr %s333, 4
          %s335 = scalar_lea.vmem %s6, %s334
        $region52: #{trittention_cube.1} parent=31 // pred_fallthru
          _
      $region32: #{trittention_cube.1} parent=5 // pred_fallthru
        _
      %p336 = scmp.le.s32.totalorder 1, %s18
      %p337 = scmp.lt.s32.totalorder %s18, 9
      %p338 = pnand %p336, %p337
      %p339 = pneg %p338
      // Predicated region
      $region53: #{trittention_cube.1} parent=5 // pred_check
        _
      $region54: #{trittention_cube.1} parent=5 // pred_check_branch
        %341 = sbr.rel (%p338) target = $region56
      $region55: #{trittention_cube.1} parent=5 // pred_region
        %s342 = ssub.s32 %s18, 1
        %p343 = scmp.lt.s32.totalorder %s27, 1
        %s344 = scalar_select %p343, %s27, 1
        %s345 = smul.addr %s344, 8
        %s346 = scalar_lea.vmem %s0, %s345
        %p347 = pneg %p56
        %p348 = pneg %p53
        %p349 = pneg %p77
        %p350 = pneg %p74
        %p351 = pneg %p98
        %p352 = pneg %p95
        %p353 = scmp.lt.s32.totalorder %s28, 3
        %s354 = scalar_select %p353, %s28, 3
        %s355 = smul.addr %s354, 4
        %s356 = smul.addr %s355, 4
        %s357 = scalar_lea.vmem %s3, %s356
        %p358 = pneg %p124
        %p359 = pneg %p121
        %p360 = scmp.lt.s32.totalorder %s28, 3
        %s361 = scalar_select %p360, %s28, 3
        %s362 = scalar_lea.vmem %s4, %s361
        %p363 = pneg %p150
        %p364 = pneg %p147
        %p365 = scmp.lt.s32.totalorder %s28, 3
        %s366 = scalar_select %p365, %s28, 3
        %s367 = smul.addr %s366, 4
        %s368 = scalar_lea.vmem %s5, %s367
        %p369 = pneg %p176
        %p370 = pneg %p173
        %p371 = scmp.lt.s32.totalorder %s28, 3
        %s372 = scalar_select %p371, %s28, 3
        %s373 = smul.addr %s372, 4
        %s374 = scalar_lea.vmem %s6, %s373
        %p375 = pneg %p202
        %p376 = pneg %p199
        %p377 = pneg %p223
        %p378 = pneg %p220
        %p379 = pneg %p244
        %p380 = pneg %p241
        %p381 = pneg %p270
        %p382 = pneg %p267
        %s383 = sand.u32 %s257, 1
        %s384 = scalar_lea.sflag [#allocation5], %s383
        %s385 = sand.u32 %s257, 1
        %s386 = smul.addr %s385, 8
        %s387 = scalar_lea.vmem [#allocation4], %s386
        %p388 = scmp.lt.s32.totalorder %s27, 1
        %s389 = scalar_select %p388, %s27, 1
        %s390 = smul.addr %s389, 8
        %s391 = scalar_lea.vmem %s0, %s390
        %p392 = scmp.lt.s32.totalorder %s28, 3
        %s393 = scalar_select %p392, %s28, 3
        %s394 = smul.addr %s393, 4
        %s395 = smul.addr %s394, 4
        %s396 = scalar_lea.vmem %s3, %s395
        %p397 = scmp.lt.s32.totalorder %s28, 3
        %s398 = scalar_select %p397, %s28, 3
        %s399 = scalar_lea.vmem %s4, %s398
        %p400 = scmp.lt.s32.totalorder %s28, 3
        %s401 = scalar_select %p400, %s28, 3
        %s402 = smul.addr %s401, 4
        %s403 = scalar_lea.vmem %s5, %s402
        %p404 = scmp.lt.s32.totalorder %s28, 3
        %s405 = scalar_select %p404, %s28, 3
        %s406 = smul.addr %s405, 4
        %s407 = scalar_lea.vmem %s6, %s406
        %p409 = scmp.eq.s32.totalorder %s28, 0
        // Predicated region
        $region57: #{trittention_cube.1} parent=55 // pred_check
          %p410 = pneg %p409
        $region58: #{trittention_cube.1} parent=55 // pred_check_branch
          %412 = sbr.rel (%p410) target = $region60
        $region59: #{trittention_cube.1} parent=55 // pred_region
          %v413 = vld [vmem:[%s391] sm:$0xff]
          %vm414 = vcmask 261120
          %v415 = vsel %vm414, %v413, 0.0
          %416 = vadd.xlane.f32.xlu0 %v415
          %v417 = vpop.xlane.xlu0 %416
          %v418 = vrcp.pop 32.0
          %v419 = vmul.f32 %v417, %v418
          %v420 = vsub.f32 %v413, %v419
          %v421 = vmul.f32 %v420, %v420
          %v422 = vsel %vm414, %v421, 0.0
          %423 = vadd.xlane.f32.xlu0 %v422
          %v424 = vpop.xlane.xlu0 %423
          %v425 = vmul.f32 %v424, %v418
          %v426 = vadd.f32 %v425, 1e-05
          %v427 = vrsqrt.pop %v426
          %v428 = vmul.f32 %v420, %v427
          %v429 = vld [vmem:[%s1] sm:$0x1]
          %v431 = vlaneseq
          %v432 = vshrl.u32 %v431, 7
          %v433 = vsub.s32 0, %v432
          %v434 = vrot.slane %v429, %v433
          %v436 = vmul.f32 %v428, %v434
          %v437 = vld [vmem:[%s2] sm:$0x1]
          %v439 = vlaneseq
          %v440 = vshrl.u32 %v439, 7
          %v441 = vsub.s32 0, %v440
          %v442 = vrot.slane %v437, %v441
          %v444 = vadd.f32 %v436, %v442
          %445 = vst.msk [vmem:[#allocation3] sm:$0xff] %vm414, %v444
        $region60: #{trittention_cube.1} parent=55 // pred_fallthru
          _
        %v446 = vld [vmem:[#allocation3] sm:$0xff]
        %v447 = vpack.c.bf16 %v446, %v446
        %v448 = vld [vmem:[%s396] sm:$0xf]
        %v449 = vld [vmem:[%s396 + $0x4] sm:$0xf]
        %v450 = vld [vmem:[%s396 + $0x8] sm:$0xf]
        %v451 = vld [vmem:[%s396 + $0xc] sm:$0xf]
        %v452 = vld [vmem:[%s399] sm:$0x1]
        %v454 = vlaneseq
        %v455 = vshrl.u32 %v454, 7
        %v456 = vsub.s32 0, %v455
        %v457 = vrot.slane %v452, %v456
        %v463 = vunpack.c.l.b16 %v448
        %v464 = vunpack.c.l.b16 %v449
        %v465 = vunpack.c.l.b16 %v450
        %v466 = vunpack.c.l.b16 %v451
        %v467 = vpack.c.b16 %v464, %v463
        %v468 = vpack.c.b16 %v466, %v465
        %vm471 = vcmask 261120
        %v473 = vsel %vm471, %v447, 0
        %475 = vmatprep.subr.bf16.mxu0 0
        %476 = vmatpush1.bf16.msra.mxu0 %v467
        %477 = vmatprep.subr.bf16.mxu0 0
        %478 = vmatpush1.bf16.msra.mxu0 %v468
        %479 = vmatprep.subr.bf16.mxu0 0
        %480 = vmatpush1.bf16.msra.mxu0 0
        %481 = vmatprep.subr.bf16.mxu0 0
        %482 = vmatpush1.bf16.msra.mxu0 0
        %483 = vmatprep.subr.bf16.mxu0 0
        %484 = vmatpush1.bf16.msra.mxu0 0
        %485 = vmatprep.subr.bf16.mxu0 0
        %486 = vmatpush1.bf16.msra.mxu0 0
        %487 = vmatprep.subr.bf16.mxu0 0
        %488 = vmatpush1.bf16.msra.mxu0 0
        %489 = vmatprep.subr.bf16.mxu0 0
        %490 = vmatpush1.bf16.msra.mxu0 0
        %491 = vmatprep.subr.bf16.mxu0 0
        %492 = vmatpush1.bf16.msra.mxu0 0
        %493 = vmatprep.subr.bf16.mxu0 0
        %494 = vmatpush1.bf16.msra.mxu0 0
        %495 = vmatprep.subr.bf16.mxu0 0
        %496 = vmatpush1.bf16.msra.mxu0 0
        %497 = vmatprep.subr.bf16.mxu0 0
        %498 = vmatpush1.bf16.msra.mxu0 0
        %499 = vmatprep.subr.bf16.mxu0 0
        %500 = vmatpush1.bf16.msra.mxu0 0
        %501 = vmatprep.subr.bf16.mxu0 0
        %502 = vmatpush1.bf16.msra.mxu0 0
        %503 = vmatprep.subr.bf16.mxu0 0
        %504 = vmatpush1.bf16.msra.mxu0 0
        %505 = vmatprep.subr.bf16.mxu0 0
        %506 = vmatpush1.bf16.msra.mxu0 0
        %507 = vmatprep.mubr.bf16.mxu0 0
        %508 = vmatmul.mubr.bf16.gmra.mrb[0].mxu0 %v473
        %v509 = vpop.f32.mrb[0].mxu0
        %v510 = vadd.f32 %v457, %v509
        %v511 = vpop.f32.mrb[0].mxu0
        %v512 = vpop.f32.mrb[0].mxu0
        %v513 = vpop.f32.mrb[0].mxu0
        %514 = vdwg.mxu0
        %v515 = vpack.c.bf16 %v510, %v510
        %v516 = vld [vmem:[%s403] sm:$0xf]
        %518 = vrot.lane.b32.xlu0 %v515, 112
        %v519 = vpop.permute.xlu0 %518
        %vm520 = vcmask 64512
        %v522 = vsel %vm520, %v519, 0
        %vm524 = vcmask 1043456
        %v526 = vsel %vm524, %v516, 0
        %528 = vmatprep.subr.bf16.mxu0 0
        %529 = vmatpush1.bf16.msra.mxu0 %v526
        %530 = vmatprep.subr.bf16.mxu0 0
        %531 = vmatpush1.bf16.msra.mxu0 0
        %532 = vmatprep.subr.bf16.mxu0 0
        %533 = vmatpush1.bf16.msra.mxu0 0
        %534 = vmatprep.subr.bf16.mxu0 0
        %535 = vmatpush1.bf16.msra.mxu0 0
        %536 = vmatprep.subr.bf16.mxu0 0
        %537 = vmatpush1.bf16.msra.mxu0 0
        %538 = vmatprep.subr.bf16.mxu0 0
        %539 = vmatpush1.bf16.msra.mxu0 0
        %540 = vmatprep.subr.bf16.mxu0 0
        %541 = vmatpush1.bf16.msra.mxu0 0
        %542 = vmatprep.subr.bf16.mxu0 0
        %543 = vmatpush1.bf16.msra.mxu0 0
        %544 = vmatprep.subr.bf16.mxu0 0
        %545 = vmatpush1.bf16.msra.mxu0 0
        %546 = vmatprep.subr.bf16.mxu0 0
        %547 = vmatpush1.bf16.msra.mxu0 0
        %548 = vmatprep.subr.bf16.mxu0 0
        %549 = vmatpush1.bf16.msra.mxu0 0
        %550 = vmatprep.subr.bf16.mxu0 0
        %551 = vmatpush1.bf16.msra.mxu0 0
        %552 = vmatprep.subr.bf16.mxu0 0
        %553 = vmatpush1.bf16.msra.mxu0 0
        %554 = vmatprep.subr.bf16.mxu0 0
        %555 = vmatpush1.bf16.msra.mxu0 0
        %556 = vmatprep.subr.bf16.mxu0 0
        %557 = vmatpush1.bf16.msra.mxu0 0
        %558 = vmatprep.subr.bf16.mxu0 0
        %559 = vmatpush1.bf16.msra.mxu0 0
        %560 = vmatprep.mubr.bf16.mxu0 0
        %561 = vmatmul.mubr.bf16.gmra.mrb[0].mxu0 %v522
        %v562 = vpop.f32.mrb[0].mxu0
        %v563 = vadd.f32 0.0, %v562
        %v564 = vpop.f32.mrb[0].mxu0
        %v565 = vpop.f32.mrb[0].mxu0
        %v566 = vpop.f32.mrb[0].mxu0
        %567 = vdwg.mxu0
        %569 = vrot.lane.b32.xlu0 %v563, 120
        %v570 = vpop.permute.xlu0 %569
        %572 = vrot.lane.b32.xlu0 %v563, 112
        %v573 = vpop.permute.xlu0 %572
        %575 = vrot.lane.b32.xlu0 %v563, 104
        %v576 = vpop.permute.xlu0 %575
        %578 = vrot.lane.b32.xlu0 %v563, 96
        %v579 = vpop.permute.xlu0 %578
        %581 = vrot.lane.b32.xlu0 %v563, 88
        %v582 = vpop.permute.xlu0 %581
        %584 = vrot.lane.b32.xlu0 %v563, 80
        %v585 = vpop.permute.xlu0 %584
        %587 = vrot.lane.b32.xlu0 %v563, 72
        %v588 = vpop.permute.xlu0 %587
        %v590 = vcombine.low %v563, %v573
        %v591 = vcombine.high %v563, %v573
        %v593 = vunpack.c.l.s4 1983009808
        %v594 = vunpack.c.0.s8 %v593
        %v595 = vlaneseq
        %v596 = vshrl.u32 %v595, 7
        %v597 = vsub.s32 %v594, %v596
        %v598 = vrot.slane %v590, %v597
        %v600 = vunpack.c.l.s4 1983009808
        %v601 = vunpack.c.0.s8 %v600
        %v602 = vlaneseq
        %v603 = vshrl.u32 %v602, 7
        %v604 = vsub.s32 %v601, %v603
        %v605 = vrot.slane %v591, %v604
        %v606 = vcombine.low %v570, %v576
        %v607 = vcombine.high %v570, %v576
        %v609 = vunpack.c.l.s4 1983009808
        %v610 = vunpack.c.0.s8 %v609
        %v611 = vlaneseq
        %v612 = vshrl.u32 %v611, 7
        %v613 = vsub.s32 %v610, %v612
        %v614 = vrot.slane %v606, %v613
        %v616 = vunpack.c.l.s4 1983009808
        %v617 = vunpack.c.0.s8 %v616
        %v618 = vlaneseq
        %v619 = vshrl.u32 %v618, 7
        %v620 = vsub.s32 %v617, %v619
        %v621 = vrot.slane %v607, %v620
        %v622 = vcombine.low %v579, %v585
        %v623 = vcombine.high %v579, %v585
        %v625 = vunpack.c.l.s4 1983009808
        %v626 = vunpack.c.0.s8 %v625
        %v627 = vlaneseq
        %v628 = vshrl.u32 %v627, 7
        %v629 = vsub.s32 %v626, %v628
        %v630 = vrot.slane %v622, %v629
        %v632 = vunpack.c.l.s4 1983009808
        %v633 = vunpack.c.0.s8 %v632
        %v634 = vlaneseq
        %v635 = vshrl.u32 %v634, 7
        %v636 = vsub.s32 %v633, %v635
        %v637 = vrot.slane %v623, %v636
        %v638 = vcombine.low %v582, %v588
        %v639 = vcombine.high %v582, %v588
        %v641 = vunpack.c.l.s4 1983009808
        %v642 = vunpack.c.0.s8 %v641
        %v643 = vlaneseq
        %v644 = vshrl.u32 %v643, 7
        %v645 = vsub.s32 %v642, %v644
        %v646 = vrot.slane %v638, %v645
        %v648 = vunpack.c.l.s4 1983009808
        %v649 = vunpack.c.0.s8 %v648
        %v650 = vlaneseq
        %v651 = vshrl.u32 %v650, 7
        %v652 = vsub.s32 %v649, %v651
        %v653 = vrot.slane %v639, %v652
        %v654 = vcombine.low %v598, %v614
        %v655 = vcombine.high %v598, %v614
        %v657 = vunpack.c.l.s4 1934713408
        %v658 = vunpack.c.0.s8 %v657
        %v659 = vlaneseq
        %v660 = vshrl.u32 %v659, 7
        %v661 = vsub.s32 %v658, %v660
        %v662 = vrot.slane %v654, %v661
        %v664 = vunpack.c.l.s4 1934713408
        %v665 = vunpack.c.0.s8 %v664
        %v666 = vlaneseq
        %v667 = vshrl.u32 %v666, 7
        %v668 = vsub.s32 %v665, %v667
        %v669 = vrot.slane %v655, %v668
        %v670 = vcombine.low %v605, %v621
        %v671 = vcombine.high %v605, %v621
        %v673 = vunpack.c.l.s4 1934713408
        %v674 = vunpack.c.0.s8 %v673
        %v675 = vlaneseq
        %v676 = vshrl.u32 %v675, 7
        %v677 = vsub.s32 %v674, %v676
        %v678 = vrot.slane %v670, %v677
        %v680 = vunpack.c.l.s4 1934713408
        %v681 = vunpack.c.0.s8 %v680
        %v682 = vlaneseq
        %v683 = vshrl.u32 %v682, 7
        %v684 = vsub.s32 %v681, %v683
        %v685 = vrot.slane %v671, %v684
        %v686 = vcombine.low %v630, %v646
        %v687 = vcombine.high %v630, %v646
        %v689 = vunpack.c.l.s4 1934713408
        %v690 = vunpack.c.0.s8 %v689
        %v691 = vlaneseq
        %v692 = vshrl.u32 %v691, 7
        %v693 = vsub.s32 %v690, %v692
        %v694 = vrot.slane %v686, %v693
        %v696 = vunpack.c.l.s4 1934713408
        %v697 = vunpack.c.0.s8 %v696
        %v698 = vlaneseq
        %v699 = vshrl.u32 %v698, 7
        %v700 = vsub.s32 %v697, %v699
        %v701 = vrot.slane %v687, %v700
        %v702 = vcombine.low %v637, %v653
        %v703 = vcombine.high %v637, %v653
        %v705 = vunpack.c.l.s4 1934713408
        %v706 = vunpack.c.0.s8 %v705
        %v707 = vlaneseq
        %v708 = vshrl.u32 %v707, 7
        %v709 = vsub.s32 %v706, %v708
        %v710 = vrot.slane %v702, %v709
        %v712 = vunpack.c.l.s4 1934713408
        %v713 = vunpack.c.0.s8 %v712
        %v714 = vlaneseq
        %v715 = vshrl.u32 %v714, 7
        %v716 = vsub.s32 %v713, %v715
        %v717 = vrot.slane %v703, %v716
        %v718 = vcombine.low %v662, %v694
        %v719 = vcombine.high %v662, %v694
        %v720 = vcombine.low %v669, %v701
        %v721 = vcombine.high %v669, %v701
        %v722 = vcombine.low %v678, %v710
        %v723 = vcombine.high %v678, %v710
        %v724 = vcombine.low %v685, %v717
        %v725 = vcombine.high %v685, %v717
        %v726 = vpack.c.bf16 %v718, %v718
        %v727 = vpack.c.bf16 %v719, %v719
        %v728 = vpack.c.bf16 %v720, %v720
        %v729 = vpack.c.bf16 %v721, %v721
        %v730 = vpack.c.bf16 %v722, %v722
        %v731 = vpack.c.bf16 %v723, %v723
        %v732 = vpack.c.bf16 %v724, %v724
        %v733 = vpack.c.bf16 %v725, %v725
        %734 = vrot.lane.b32.xlu0 %v515, 120
        %v735 = vpop.permute.xlu0 %734
        %v737 = vsel %vm520, %v726, 0
        %v740 = vsel %vm520, %v735, 0
        %742 = vmatprep.subr.bf16.mxu0 0
        %743 = vmatpush1.bf16.xpose.msra.mxu0 %v740
        %744 = vmatprep.subr.bf16.mxu0 0
        %745 = vmatpush1.bf16.xpose.msra.mxu0 0
        %746 = vmatprep.subr.bf16.mxu0 0
        %747 = vmatpush1.bf16.xpose.msra.mxu0 0
        %748 = vmatprep.subr.bf16.mxu0 0
        %749 = vmatpush1.bf16.xpose.msra.mxu0 0
        %750 = vmatprep.subr.bf16.mxu0 0
        %751 = vmatpush1.bf16.xpose.msra.mxu0 0
        %752 = vmatprep.subr.bf16.mxu0 0
        %753 = vmatpush1.bf16.xpose.msra.mxu0 0
        %754 = vmatprep.subr.bf16.mxu0 0
        %755 = vmatpush1.bf16.xpose.msra.mxu0 0
        %756 = vmatprep.subr.bf16.mxu0 0
        %757 = vmatpush1.bf16.xpose.msra.mxu0 0
        %758 = vmatprep.subr.bf16.mxu0 0
        %759 = vmatpush1.bf16.xpose.msra.mxu0 0
        %760 = vmatprep.subr.bf16.mxu0 0
        %761 = vmatpush1.bf16.xpose.msra.mxu0 0
        %762 = vmatprep.subr.bf16.mxu0 0
        %763 = vmatpush1.bf16.xpose.msra.mxu0 0
        %764 = vmatprep.subr.bf16.mxu0 0
        %765 = vmatpush1.bf16.xpose.msra.mxu0 0
        %766 = vmatprep.subr.bf16.mxu0 0
        %767 = vmatpush1.bf16.xpose.msra.mxu0 0
        %768 = vmatprep.subr.bf16.mxu0 0
        %769 = vmatpush1.bf16.xpose.msra.mxu0 0
        %770 = vmatprep.subr.bf16.mxu0 0
        %771 = vmatpush1.bf16.xpose.msra.mxu0 0
        %772 = vmatprep.subr.bf16.mxu0 0
        %773 = vmatpush1.bf16.xpose.msra.mxu0 0
        %774 = vmatprep.mubr.bf16.mxu0 0
        %775 = vmatmul.mubr.bf16.gmra.mrb[0].mxu0 %v737
        %v776 = vpop.f32.mrb[0].mxu0
        %v777 = vadd.f32 0.0, %v776
        %v778 = vpop.f32.mrb[0].mxu0
        %v779 = vpop.f32.mrb[0].mxu0
        %v780 = vpop.f32.mrb[0].mxu0
        %781 = vdwg.mxu0
        %v783 = vsel %vm520, %v727, 0
        %785 = vmatprep.subr.bf16.mxu0 0
        %786 = vmatpush1.bf16.xpose.msra.mxu0 %v740
        %787 = vmatprep.subr.bf16.mxu0 0
        %788 = vmatpush1.bf16.xpose.msra.mxu0 0
        %789 = vmatprep.subr.bf16.mxu0 0
        %790 = vmatpush1.bf16.xpose.msra.mxu0 0
        %791 = vmatprep.subr.bf16.mxu0 0
        %792 = vmatpush1.bf16.xpose.msra.mxu0 0
        %793 = vmatprep.subr.bf16.mxu0 0
        %794 = vmatpush1.bf16.xpose.msra.mxu0 0
        %795 = vmatprep.subr.bf16.mxu0 0
        %796 = vmatpush1.bf16.xpose.msra.mxu0 0
        %797 = vmatprep.subr.bf16.mxu0 0
        %798 = vmatpush1.bf16.xpose.msra.mxu0 0
        %799 = vmatprep.subr.bf16.mxu0 0
        %800 = vmatpush1.bf16.xpose.msra.mxu0 0
        %801 = vmatprep.subr.bf16.mxu0 0
        %802 = vmatpush1.bf16.xpose.msra.mxu0 0
        %803 = vmatprep.subr.bf16.mxu0 0
        %804 = vmatpush1.bf16.xpose.msra.mxu0 0
        %805 = vmatprep.subr.bf16.mxu0 0
        %806 = vmatpush1.bf16.xpose.msra.mxu0 0
        %807 = vmatprep.subr.bf16.mxu0 0
        %808 = vmatpush1.bf16.xpose.msra.mxu0 0
        %809 = vmatprep.subr.bf16.mxu0 0
        %810 = vmatpush1.bf16.xpose.msra.mxu0 0
        %811 = vmatprep.subr.bf16.mxu0 0
        %812 = vmatpush1.bf16.xpose.msra.mxu0 0
        %813 = vmatprep.subr.bf16.mxu0 0
        %814 = vmatpush1.bf16.xpose.msra.mxu0 0
        %815 = vmatprep.subr.bf16.mxu0 0
        %816 = vmatpush1.bf16.xpose.msra.mxu0 0
        %817 = vmatprep.mubr.bf16.mxu0 0
        %818 = vmatmul.mubr.bf16.gmra.mrb[0].mxu0 %v783
        %v819 = vpop.f32.mrb[0].mxu0
        %v820 = vadd.f32 0.0, %v819
        %v821 = vpop.f32.mrb[0].mxu0
        %v822 = vpop.f32.mrb[0].mxu0
        %v823 = vpop.f32.mrb[0].mxu0
        %824 = vdwg.mxu0
        %v826 = vsel %vm520, %v728, 0
        %828 = vmatprep.subr.bf16.mxu0 0
        %829 = vmatpush1.bf16.xpose.msra.mxu0 %v740
        %830 = vmatprep.subr.bf16.mxu0 0
        %831 = vmatpush1.bf16.xpose.msra.mxu0 0
        %832 = vmatprep.subr.bf16.mxu0 0
        %833 = vmatpush1.bf16.xpose.msra.mxu0 0
        %834 = vmatprep.subr.bf16.mxu0 0
        %835 = vmatpush1.bf16.xpose.msra.mxu0 0
        %836 = vmatprep.subr.bf16.mxu0 0
        %837 = vmatpush1.bf16.xpose.msra.mxu0 0
        %838 = vmatprep.subr.bf16.mxu0 0
        %839 = vmatpush1.bf16.xpose.msra.mxu0 0
        %840 = vmatprep.subr.bf16.mxu0 0
        %841 = vmatpush1.bf16.xpose.msra.mxu0 0
        %842 = vmatprep.subr.bf16.mxu0 0
        %843 = vmatpush1.bf16.xpose.msra.mxu0 0
        %844 = vmatprep.subr.bf16.mxu0 0
        %845 = vmatpush1.bf16.xpose.msra.mxu0 0
        %846 = vmatprep.subr.bf16.mxu0 0
        %847 = vmatpush1.bf16.xpose.msra.mxu0 0
        %848 = vmatprep.subr.bf16.mxu0 0
        %849 = vmatpush1.bf16.xpose.msra.mxu0 0
        %850 = vmatprep.subr.bf16.mxu0 0
        %851 = vmatpush1.bf16.xpose.msra.mxu0 0
        %852 = vmatprep.subr.bf16.mxu0 0
        %853 = vmatpush1.bf16.xpose.msra.mxu0 0
        %854 = vmatprep.subr.bf16.mxu0 0
        %855 = vmatpush1.bf16.xpose.msra.mxu0 0
        %856 = vmatprep.subr.bf16.mxu0 0
        %857 = vmatpush1.bf16.xpose.msra.mxu0 0
        %858 = vmatprep.subr.bf16.mxu0 0
        %859 = vmatpush1.bf16.xpose.msra.mxu0 0
        %860 = vmatprep.mubr.bf16.mxu0 0
        %861 = vmatmul.mubr.bf16.gmra.mrb[0].mxu0 %v826
        %v862 = vpop.f32.mrb[0].mxu0
        %v863 = vadd.f32 0.0, %v862
        %v864 = vpop.f32.mrb[0].mxu0
        %v865 = vpop.f32.mrb[0].mxu0
        %v866 = vpop.f32.mrb[0].mxu0
        %867 = vdwg.mxu0
        %v869 = vsel %vm520, %v729, 0
        %871 = vmatprep.subr.bf16.mxu0 0
        %872 = vmatpush1.bf16.xpose.msra.mxu0 %v740
        %873 = vmatprep.subr.bf16.mxu0 0
        %874 = vmatpush1.bf16.xpose.msra.mxu0 0
        %875 = vmatprep.subr.bf16.mxu0 0
        %876 = vmatpush1.bf16.xpose.msra.mxu0 0
        %877 = vmatprep.subr.bf16.mxu0 0
        %878 = vmatpush1.bf16.xpose.msra.mxu0 0
        %879 = vmatprep.subr.bf16.mxu0 0
        %880 = vmatpush1.bf16.xpose.msra.mxu0 0
        %881 = vmatprep.subr.bf16.mxu0 0
        %882 = vmatpush1.bf16.xpose.msra.mxu0 0
        %883 = vmatprep.subr.bf16.mxu0 0
        %884 = vmatpush1.bf16.xpose.msra.mxu0 0
        %885 = vmatprep.subr.bf16.mxu0 0
        %886 = vmatpush1.bf16.xpose.msra.mxu0 0
        %887 = vmatprep.subr.bf16.mxu0 0
        %888 = vmatpush1.bf16.xpose.msra.mxu0 0
        %889 = vmatprep.subr.bf16.mxu0 0
        %890 = vmatpush1.bf16.xpose.msra.mxu0 0
        %891 = vmatprep.subr.bf16.mxu0 0
        %892 = vmatpush1.bf16.xpose.msra.mxu0 0
        %893 = vmatprep.subr.bf16.mxu0 0
        %894 = vmatpush1.bf16.xpose.msra.mxu0 0
        %895 = vmatprep.subr.bf16.mxu0 0
        %896 = vmatpush1.bf16.xpose.msra.mxu0 0
        %897 = vmatprep.subr.bf16.mxu0 0
        %898 = vmatpush1.bf16.xpose.msra.mxu0 0
        %899 = vmatprep.subr.bf16.mxu0 0
        %900 = vmatpush1.bf16.xpose.msra.mxu0 0
        %901 = vmatprep.subr.bf16.mxu0 0
        %902 = vmatpush1.bf16.xpose.msra.mxu0 0
        %903 = vmatprep.mubr.bf16.mxu0 0
        %904 = vmatmul.mubr.bf16.gmra.mrb[0].mxu0 %v869
        %v905 = vpop.f32.mrb[0].mxu0
        %v906 = vadd.f32 0.0, %v905
        %v907 = vpop.f32.mrb[0].mxu0
        %v908 = vpop.f32.mrb[0].mxu0
        %v909 = vpop.f32.mrb[0].mxu0
        %910 = vdwg.mxu0
        %v912 = vsel %vm520, %v730, 0
        %914 = vmatprep.subr.bf16.mxu0 0
        %915 = vmatpush1.bf16.xpose.msra.mxu0 %v740
        %916 = vmatprep.subr.bf16.mxu0 0
        %917 = vmatpush1.bf16.xpose.msra.mxu0 0
        %918 = vmatprep.subr.bf16.mxu0 0
        %919 = vmatpush1.bf16.xpose.msra.mxu0 0
        %920 = vmatprep.subr.bf16.mxu0 0
        %921 = vmatpush1.bf16.xpose.msra.mxu0 0
        %922 = vmatprep.subr.bf16.mxu0 0
        %923 = vmatpush1.bf16.xpose.msra.mxu0 0
        %924 = vmatprep.subr.bf16.mxu0 0
        %925 = vmatpush1.bf16.xpose.msra.mxu0 0
        %926 = vmatprep.subr.bf16.mxu0 0
        %927 = vmatpush1.bf16.xpose.msra.mxu0 0
        %928 = vmatprep.subr.bf16.mxu0 0
        %929 = vmatpush1.bf16.xpose.msra.mxu0 0
        %930 = vmatprep.subr.bf16.mxu0 0
        %931 = vmatpush1.bf16.xpose.msra.mxu0 0
        %932 = vmatprep.subr.bf16.mxu0 0
        %933 = vmatpush1.bf16.xpose.msra.mxu0 0
        %934 = vmatprep.subr.bf16.mxu0 0
        %935 = vmatpush1.bf16.xpose.msra.mxu0 0
        %936 = vmatprep.subr.bf16.mxu0 0
        %937 = vmatpush1.bf16.xpose.msra.mxu0 0
        %938 = vmatprep.subr.bf16.mxu0 0
        %939 = vmatpush1.bf16.xpose.msra.mxu0 0
        %940 = vmatprep.subr.bf16.mxu0 0
        %941 = vmatpush1.bf16.xpose.msra.mxu0 0
        %942 = vmatprep.subr.bf16.mxu0 0
        %943 = vmatpush1.bf16.xpose.msra.mxu0 0
        %944 = vmatprep.subr.bf16.mxu0 0
        %945 = vmatpush1.bf16.xpose.msra.mxu0 0
        %946 = vmatprep.mubr.bf16.mxu0 0
        %947 = vmatmul.mubr.bf16.gmra.mrb[0].mxu0 %v912
        %v948 = vpop.f32.mrb[0].mxu0
        %v949 = vadd.f32 0.0, %v948
        %v950 = vpop.f32.mrb[0].mxu0
        %v951 = vpop.f32.mrb[0].mxu0
        %v952 = vpop.f32.mrb[0].mxu0
        %953 = vdwg.mxu0
        %v955 = vsel %vm520, %v731, 0
        %957 = vmatprep.subr.bf16.mxu0 0
        %958 = vmatpush1.bf16.xpose.msra.mxu0 %v740
        %959 = vmatprep.subr.bf16.mxu0 0
        %960 = vmatpush1.bf16.xpose.msra.mxu0 0
        %961 = vmatprep.subr.bf16.mxu0 0
        %962 = vmatpush1.bf16.xpose.msra.mxu0 0
        %963 = vmatprep.subr.bf16.mxu0 0
        %964 = vmatpush1.bf16.xpose.msra.mxu0 0
        %965 = vmatprep.subr.bf16.mxu0 0
        %966 = vmatpush1.bf16.xpose.msra.mxu0 0
        %967 = vmatprep.subr.bf16.mxu0 0
        %968 = vmatpush1.bf16.xpose.msra.mxu0 0
        %969 = vmatprep.subr.bf16.mxu0 0
        %970 = vmatpush1.bf16.xpose.msra.mxu0 0
        %971 = vmatprep.subr.bf16.mxu0 0
        %972 = vmatpush1.bf16.xpose.msra.mxu0 0
        %973 = vmatprep.subr.bf16.mxu0 0
        %974 = vmatpush1.bf16.xpose.msra.mxu0 0
        %975 = vmatprep.subr.bf16.mxu0 0
        %976 = vmatpush1.bf16.xpose.msra.mxu0 0
        %977 = vmatprep.subr.bf16.mxu0 0
        %978 = vmatpush1.bf16.xpose.msra.mxu0 0
        %979 = vmatprep.subr.bf16.mxu0 0
        %980 = vmatpush1.bf16.xpose.msra.mxu0 0
        %981 = vmatprep.subr.bf16.mxu0 0
        %982 = vmatpush1.bf16.xpose.msra.mxu0 0
        %983 = vmatprep.subr.bf16.mxu0 0
        %984 = vmatpush1.bf16.xpose.msra.mxu0 0
        %985 = vmatprep.subr.bf16.mxu0 0
        %986 = vmatpush1.bf16.xpose.msra.mxu0 0
        %987 = vmatprep.subr.bf16.mxu0 0
        %988 = vmatpush1.bf16.xpose.msra.mxu0 0
        %989 = vmatprep.mubr.bf16.mxu0 0
        %990 = vmatmul.mubr.bf16.gmra.mrb[0].mxu0 %v955
        %v991 = vpop.f32.mrb[0].mxu0
        %v992 = vadd.f32 0.0, %v991
        %v993 = vpop.f32.mrb[0].mxu0
        %v994 = vpop.f32.mrb[0].mxu0
        %v995 = vpop.f32.mrb[0].mxu0
        %996 = vdwg.mxu0
        %v998 = vsel %vm520, %v732, 0
        %1000 = vmatprep.subr.bf16.mxu0 0
        %1001 = vmatpush1.bf16.xpose.msra.mxu0 %v740
        %1002 = vmatprep.subr.bf16.mxu0 0
        %1003 = vmatpush1.bf16.xpose.msra.mxu0 0
        %1004 = vmatprep.subr.bf16.mxu0 0
        %1005 = vmatpush1.bf16.xpose.msra.mxu0 0
        %1006 = vmatprep.subr.bf16.mxu0 0
        %1007 = vmatpush1.bf16.xpose.msra.mxu0 0
        %1008 = vmatprep.subr.bf16.mxu0 0
        %1009 = vmatpush1.bf16.xpose.msra.mxu0 0
        %1010 = vmatprep.subr.bf16.mxu0 0
        %1011 = vmatpush1.bf16.xpose.msra.mxu0 0
        %1012 = vmatprep.subr.bf16.mxu0 0
        %1013 = vmatpush1.bf16.xpose.msra.mxu0 0
        %1014 = vmatprep.subr.bf16.mxu0 0
        %1015 = vmatpush1.bf16.xpose.msra.mxu0 0
        %1016 = vmatprep.subr.bf16.mxu0 0
        %1017 = vmatpush1.bf16.xpose.msra.mxu0 0
        %1018 = vmatprep.subr.bf16.mxu0 0
        %1019 = vmatpush1.bf16.xpose.msra.mxu0 0
        %1020 = vmatprep.subr.bf16.mxu0 0
        %1021 = vmatpush1.bf16.xpose.msra.mxu0 0
        %1022 = vmatprep.subr.bf16.mxu0 0
        %1023 = vmatpush1.bf16.xpose.msra.mxu0 0
        %1024 = vmatprep.subr.bf16.mxu0 0
        %1025 = vmatpush1.bf16.xpose.msra.mxu0 0
        %1026 = vmatprep.subr.bf16.mxu0 0
        %1027 = vmatpush1.bf16.xpose.msra.mxu0 0
        %1028 = vmatprep.subr.bf16.mxu0 0
        %1029 = vmatpush1.bf16.xpose.msra.mxu0 0
        %1030 = vmatprep.subr.bf16.mxu0 0
        %1031 = vmatpush1.bf16.xpose.msra.mxu0 0
        %1032 = vmatprep.mubr.bf16.mxu0 0
        %1033 = vmatmul.mubr.bf16.gmra.mrb[0].mxu0 %v998
        %v1034 = vpop.f32.mrb[0].mxu0
        %v1035 = vadd.f32 0.0, %v1034
        %v1036 = vpop.f32.mrb[0].mxu0
        %v1037 = vpop.f32.mrb[0].mxu0
        %v1038 = vpop.f32.mrb[0].mxu0
        %1039 = vdwg.mxu0
        %v1041 = vsel %vm520, %v733, 0
        %1043 = vmatprep.subr.bf16.mxu0 0
        %1044 = vmatpush1.bf16.xpose.msra.mxu0 %v740
        %1045 = vmatprep.subr.bf16.mxu0 0
        %1046 = vmatpush1.bf16.xpose.msra.mxu0 0
        %1047 = vmatprep.subr.bf16.mxu0 0
        %1048 = vmatpush1.bf16.xpose.msra.mxu0 0
        %1049 = vmatprep.subr.bf16.mxu0 0
        %1050 = vmatpush1.bf16.xpose.msra.mxu0 0
        %1051 = vmatprep.subr.bf16.mxu0 0
        %1052 = vmatpush1.bf16.xpose.msra.mxu0 0
        %1053 = vmatprep.subr.bf16.mxu0 0
        %1054 = vmatpush1.bf16.xpose.msra.mxu0 0
        %1055 = vmatprep.subr.bf16.mxu0 0
        %1056 = vmatpush1.bf16.xpose.msra.mxu0 0
        %1057 = vmatprep.subr.bf16.mxu0 0
        %1058 = vmatpush1.bf16.xpose.msra.mxu0 0
        %1059 = vmatprep.subr.bf16.mxu0 0
        %1060 = vmatpush1.bf16.xpose.msra.mxu0 0
        %1061 = vmatprep.subr.bf16.mxu0 0
        %1062 = vmatpush1.bf16.xpose.msra.mxu0 0
        %1063 = vmatprep.subr.bf16.mxu0 0
        %1064 = vmatpush1.bf16.xpose.msra.mxu0 0
        %1065 = vmatprep.subr.bf16.mxu0 0
        %1066 = vmatpush1.bf16.xpose.msra.mxu0 0
        %1067 = vmatprep.subr.bf16.mxu0 0
        %1068 = vmatpush1.bf16.xpose.msra.mxu0 0
        %1069 = vmatprep.subr.bf16.mxu0 0
        %1070 = vmatpush1.bf16.xpose.msra.mxu0 0
        %1071 = vmatprep.subr.bf16.mxu0 0
        %1072 = vmatpush1.bf16.xpose.msra.mxu0 0
        %1073 = vmatprep.subr.bf16.mxu0 0
        %1074 = vmatpush1.bf16.xpose.msra.mxu0 0
        %1075 = vmatprep.mubr.bf16.mxu0 0
        %1076 = vmatmul.mubr.bf16.gmra.mrb[0].mxu0 %v1041
        %v1077 = vpop.f32.mrb[0].mxu0
        %v1078 = vadd.f32 0.0, %v1077
        %v1079 = vpop.f32.mrb[0].mxu0
        %v1080 = vpop.f32.mrb[0].mxu0
        %v1081 = vpop.f32.mrb[0].mxu0
        %1082 = vdwg.mxu0
        %v1083 = vpack.c.bf16 %v777, %v777
        %v1084 = vpack.c.bf16 %v820, %v820
        %v1085 = vpack.c.bf16 %v863, %v863
        %v1086 = vpack.c.bf16 %v906, %v906
        %v1087 = vpack.c.bf16 %v949, %v949
        %v1088 = vpack.c.bf16 %v992, %v992
        %v1089 = vpack.c.bf16 %v1035, %v1035
        %v1090 = vpack.c.bf16 %v1078, %v1078
        %v1092 = vsel %vm520, %v515, 0
        %v1095 = vsel %vm524, %v1083, 0
        %1097 = vmatprep.subr.bf16.mxu0 0
        %1098 = vmatpush1.bf16.msra.mxu0 %v1095
        %1099 = vmatprep.subr.bf16.mxu0 0
        %1100 = vmatpush1.bf16.msra.mxu0 0
        %1101 = vmatprep.subr.bf16.mxu0 0
        %1102 = vmatpush1.bf16.msra.mxu0 0
        %1103 = vmatprep.subr.bf16.mxu0 0
        %1104 = vmatpush1.bf16.msra.mxu0 0
        %1105 = vmatprep.subr.bf16.mxu0 0
        %1106 = vmatpush1.bf16.msra.mxu0 0
        %1107 = vmatprep.subr.bf16.mxu0 0
        %1108 = vmatpush1.bf16.msra.mxu0 0
        %1109 = vmatprep.subr.bf16.mxu0 0
        %1110 = vmatpush1.bf16.msra.mxu0 0
        %1111 = vmatprep.subr.bf16.mxu0 0
        %1112 = vmatpush1.bf16.msra.mxu0 0
        %1113 = vmatprep.subr.bf16.mxu0 0
        %1114 = vmatpush1.bf16.msra.mxu0 0
        %1115 = vmatprep.subr.bf16.mxu0 0
        %1116 = vmatpush1.bf16.msra.mxu0 0
        %1117 = vmatprep.subr.bf16.mxu0 0
        %1118 = vmatpush1.bf16.msra.mxu0 0
        %1119 = vmatprep.subr.bf16.mxu0 0
        %1120 = vmatpush1.bf16.msra.mxu0 0
        %1121 = vmatprep.subr.bf16.mxu0 0
        %1122 = vmatpush1.bf16.msra.mxu0 0
        %1123 = vmatprep.subr.bf16.mxu0 0
        %1124 = vmatpush1.bf16.msra.mxu0 0
        %1125 = vmatprep.subr.bf16.mxu0 0
        %1126 = vmatpush1.bf16.msra.mxu0 0
        %1127 = vmatprep.subr.bf16.mxu0 0
        %1128 = vmatpush1.bf16.msra.mxu0 0
        %1129 = vmatprep.mubr.bf16.mxu0 0
        %1130 = vmatmul.mubr.bf16.gmra.mrb[0].mxu0 %v1092
        %v1131 = vpop.f32.mrb[0].mxu0
        %v1132 = vadd.f32 0.0, %v1131
        %v1133 = vpop.f32.mrb[0].mxu0
        %v1134 = vpop.f32.mrb[0].mxu0
        %v1135 = vpop.f32.mrb[0].mxu0
        %1136 = vdwg.mxu0
        %v1138 = vsel %vm524, %v1084, 0
        %1140 = vmatprep.subr.bf16.mxu0 0
        %1141 = vmatpush1.bf16.msra.mxu0 %v1138
        %1142 = vmatprep.subr.bf16.mxu0 0
        %1143 = vmatpush1.bf16.msra.mxu0 0
        %1144 = vmatprep.subr.bf16.mxu0 0
        %1145 = vmatpush1.bf16.msra.mxu0 0
        %1146 = vmatprep.subr.bf16.mxu0 0
        %1147 = vmatpush1.bf16.msra.mxu0 0
        %1148 = vmatprep.subr.bf16.mxu0 0
        %1149 = vmatpush1.bf16.msra.mxu0 0
        %1150 = vmatprep.subr.bf16.mxu0 0
        %1151 = vmatpush1.bf16.msra.mxu0 0
        %1152 = vmatprep.subr.bf16.mxu0 0
        %1153 = vmatpush1.bf16.msra.mxu0 0
        %1154 = vmatprep.subr.bf16.mxu0 0
        %1155 = vmatpush1.bf16.msra.mxu0 0
        %1156 = vmatprep.subr.bf16.mxu0 0
        %1157 = vmatpush1.bf16.msra.mxu0 0
        %1158 = vmatprep.subr.bf16.mxu0 0
        %1159 = vmatpush1.bf16.msra.mxu0 0
        %1160 = vmatprep.subr.bf16.mxu0 0
        %1161 = vmatpush1.bf16.msra.mxu0 0
        %1162 = vmatprep.subr.bf16.mxu0 0
        %1163 = vmatpush1.bf16.msra.mxu0 0
        %1164 = vmatprep.subr.bf16.mxu0 0
        %1165 = vmatpush1.bf16.msra.mxu0 0
        %1166 = vmatprep.subr.bf16.mxu0 0
        %1167 = vmatpush1.bf16.msra.mxu0 0
        %1168 = vmatprep.subr.bf16.mxu0 0
        %1169 = vmatpush1.bf16.msra.mxu0 0
        %1170 = vmatprep.subr.bf16.mxu0 0
        %1171 = vmatpush1.bf16.msra.mxu0 0
        %1172 = vmatprep.mubr.bf16.mxu0 0
        %1173 = vmatmul.mubr.bf16.gmra.mrb[0].mxu0 %v1092
        %v1174 = vpop.f32.mrb[0].mxu0
        %v1175 = vadd.f32 0.0, %v1174
        %v1176 = vpop.f32.mrb[0].mxu0
        %v1177 = vpop.f32.mrb[0].mxu0
        %v1178 = vpop.f32.mrb[0].mxu0
        %1179 = vdwg.mxu0
        %v1181 = vsel %vm524, %v1085, 0
        %1183 = vmatprep.subr.bf16.mxu0 0
        %1184 = vmatpush1.bf16.msra.mxu0 %v1181
        %1185 = vmatprep.subr.bf16.mxu0 0
        %1186 = vmatpush1.bf16.msra.mxu0 0
        %1187 = vmatprep.subr.bf16.mxu0 0
        %1188 = vmatpush1.bf16.msra.mxu0 0
        %1189 = vmatprep.subr.bf16.mxu0 0
        %1190 = vmatpush1.bf16.msra.mxu0 0
        %1191 = vmatprep.subr.bf16.mxu0 0
        %1192 = vmatpush1.bf16.msra.mxu0 0
        %1193 = vmatprep.subr.bf16.mxu0 0
        %1194 = vmatpush1.bf16.msra.mxu0 0
        %1195 = vmatprep.subr.bf16.mxu0 0
        %1196 = vmatpush1.bf16.msra.mxu0 0
        %1197 = vmatprep.subr.bf16.mxu0 0
        %1198 = vmatpush1.bf16.msra.mxu0 0
        %1199 = vmatprep.subr.bf16.mxu0 0
        %1200 = vmatpush1.bf16.msra.mxu0 0
        %1201 = vmatprep.subr.bf16.mxu0 0
        %1202 = vmatpush1.bf16.msra.mxu0 0
        %1203 = vmatprep.subr.bf16.mxu0 0
        %1204 = vmatpush1.bf16.msra.mxu0 0
        %1205 = vmatprep.subr.bf16.mxu0 0
        %1206 = vmatpush1.bf16.msra.mxu0 0
        %1207 = vmatprep.subr.bf16.mxu0 0
        %1208 = vmatpush1.bf16.msra.mxu0 0
        %1209 = vmatprep.subr.bf16.mxu0 0
        %1210 = vmatpush1.bf16.msra.mxu0 0
        %1211 = vmatprep.subr.bf16.mxu0 0
        %1212 = vmatpush1.bf16.msra.mxu0 0
        %1213 = vmatprep.subr.bf16.mxu0 0
        %1214 = vmatpush1.bf16.msra.mxu0 0
        %1215 = vmatprep.mubr.bf16.mxu0 0
        %1216 = vmatmul.mubr.bf16.gmra.mrb[0].mxu0 %v1092
        %v1217 = vpop.f32.mrb[0].mxu0
        %v1218 = vadd.f32 0.0, %v1217
        %v1219 = vpop.f32.mrb[0].mxu0
        %v1220 = vpop.f32.mrb[0].mxu0
        %v1221 = vpop.f32.mrb[0].mxu0
        %1222 = vdwg.mxu0
        %v1224 = vsel %vm524, %v1086, 0
        %1226 = vmatprep.subr.bf16.mxu0 0
        %1227 = vmatpush1.bf16.msra.mxu0 %v1224
        %1228 = vmatprep.subr.bf16.mxu0 0
        %1229 = vmatpush1.bf16.msra.mxu0 0
        %1230 = vmatprep.subr.bf16.mxu0 0
        %1231 = vmatpush1.bf16.msra.mxu0 0
        %1232 = vmatprep.subr.bf16.mxu0 0
        %1233 = vmatpush1.bf16.msra.mxu0 0
        %1234 = vmatprep.subr.bf16.mxu0 0
        %1235 = vmatpush1.bf16.msra.mxu0 0
        %1236 = vmatprep.subr.bf16.mxu0 0
        %1237 = vmatpush1.bf16.msra.mxu0 0
        %1238 = vmatprep.subr.bf16.mxu0 0
        %1239 = vmatpush1.bf16.msra.mxu0 0
        %1240 = vmatprep.subr.bf16.mxu0 0
        %1241 = vmatpush1.bf16.msra.mxu0 0
        %1242 = vmatprep.subr.bf16.mxu0 0
        %1243 = vmatpush1.bf16.msra.mxu0 0
        %1244 = vmatprep.subr.bf16.mxu0 0
        %1245 = vmatpush1.bf16.msra.mxu0 0
        %1246 = vmatprep.subr.bf16.mxu0 0
        %1247 = vmatpush1.bf16.msra.mxu0 0
        %1248 = vmatprep.subr.bf16.mxu0 0
        %1249 = vmatpush1.bf16.msra.mxu0 0
        %1250 = vmatprep.subr.bf16.mxu0 0
        %1251 = vmatpush1.bf16.msra.mxu0 0
        %1252 = vmatprep.subr.bf16.mxu0 0
        %1253 = vmatpush1.bf16.msra.mxu0 0
        %1254 = vmatprep.subr.bf16.mxu0 0
        %1255 = vmatpush1.bf16.msra.mxu0 0
        %1256 = vmatprep.subr.bf16.mxu0 0
        %1257 = vmatpush1.bf16.msra.mxu0 0
        %1258 = vmatprep.mubr.bf16.mxu0 0
        %1259 = vmatmul.mubr.bf16.gmra.mrb[0].mxu0 %v1092
        %v1260 = vpop.f32.mrb[0].mxu0
        %v1261 = vadd.f32 0.0, %v1260
        %v1262 = vpop.f32.mrb[0].mxu0
        %v1263 = vpop.f32.mrb[0].mxu0
        %v1264 = vpop.f32.mrb[0].mxu0
        %1265 = vdwg.mxu0
        %v1267 = vsel %vm524, %v1087, 0
        %1269 = vmatprep.subr.bf16.mxu0 0
        %1270 = vmatpush1.bf16.msra.mxu0 %v1267
        %1271 = vmatprep.subr.bf16.mxu0 0
        %1272 = vmatpush1.bf16.msra.mxu0 0
        %1273 = vmatprep.subr.bf16.mxu0 0
        %1274 = vmatpush1.bf16.msra.mxu0 0
        %1275 = vmatprep.subr.bf16.mxu0 0
        %1276 = vmatpush1.bf16.msra.mxu0 0
        %1277 = vmatprep.subr.bf16.mxu0 0
        %1278 = vmatpush1.bf16.msra.mxu0 0
        %1279 = vmatprep.subr.bf16.mxu0 0
        %1280 = vmatpush1.bf16.msra.mxu0 0
        %1281 = vmatprep.subr.bf16.mxu0 0
        %1282 = vmatpush1.bf16.msra.mxu0 0
        %1283 = vmatprep.subr.bf16.mxu0 0
        %1284 = vmatpush1.bf16.msra.mxu0 0
        %1285 = vmatprep.subr.bf16.mxu0 0
        %1286 = vmatpush1.bf16.msra.mxu0 0
        %1287 = vmatprep.subr.bf16.mxu0 0
        %1288 = vmatpush1.bf16.msra.mxu0 0
        %1289 = vmatprep.subr.bf16.mxu0 0
        %1290 = vmatpush1.bf16.msra.mxu0 0
        %1291 = vmatprep.subr.bf16.mxu0 0
        %1292 = vmatpush1.bf16.msra.mxu0 0
        %1293 = vmatprep.subr.bf16.mxu0 0
        %1294 = vmatpush1.bf16.msra.mxu0 0
        %1295 = vmatprep.subr.bf16.mxu0 0
        %1296 = vmatpush1.bf16.msra.mxu0 0
        %1297 = vmatprep.subr.bf16.mxu0 0
        %1298 = vmatpush1.bf16.msra.mxu0 0
        %1299 = vmatprep.subr.bf16.mxu0 0
        %1300 = vmatpush1.bf16.msra.mxu0 0
        %1301 = vmatprep.mubr.bf16.mxu0 0
        %1302 = vmatmul.mubr.bf16.gmra.mrb[0].mxu0 %v1092
        %v1303 = vpop.f32.mrb[0].mxu0
        %v1304 = vadd.f32 0.0, %v1303
        %v1305 = vpop.f32.mrb[0].mxu0
        %v1306 = vpop.f32.mrb[0].mxu0
        %v1307 = vpop.f32.mrb[0].mxu0
        %1308 = vdwg.mxu0
        %v1310 = vsel %vm524, %v1088, 0
        %1312 = vmatprep.subr.bf16.mxu0 0
        %1313 = vmatpush1.bf16.msra.mxu0 %v1310
        %1314 = vmatprep.subr.bf16.mxu0 0
        %1315 = vmatpush1.bf16.msra.mxu0 0
        %1316 = vmatprep.subr.bf16.mxu0 0
        %1317 = vmatpush1.bf16.msra.mxu0 0
        %1318 = vmatprep.subr.bf16.mxu0 0
        %1319 = vmatpush1.bf16.msra.mxu0 0
        %1320 = vmatprep.subr.bf16.mxu0 0
        %1321 = vmatpush1.bf16.msra.mxu0 0
        %1322 = vmatprep.subr.bf16.mxu0 0
        %1323 = vmatpush1.bf16.msra.mxu0 0
        %1324 = vmatprep.subr.bf16.mxu0 0
        %1325 = vmatpush1.bf16.msra.mxu0 0
        %1326 = vmatprep.subr.bf16.mxu0 0
        %1327 = vmatpush1.bf16.msra.mxu0 0
        %1328 = vmatprep.subr.bf16.mxu0 0
        %1329 = vmatpush1.bf16.msra.mxu0 0
        %1330 = vmatprep.subr.bf16.mxu0 0
        %1331 = vmatpush1.bf16.msra.mxu0 0
        %1332 = vmatprep.subr.bf16.mxu0 0
        %1333 = vmatpush1.bf16.msra.mxu0 0
        %1334 = vmatprep.subr.bf16.mxu0 0
        %1335 = vmatpush1.bf16.msra.mxu0 0
        %1336 = vmatprep.subr.bf16.mxu0 0
        %1337 = vmatpush1.bf16.msra.mxu0 0
        %1338 = vmatprep.subr.bf16.mxu0 0
        %1339 = vmatpush1.bf16.msra.mxu0 0
        %1340 = vmatprep.subr.bf16.mxu0 0
        %1341 = vmatpush1.bf16.msra.mxu0 0
        %1342 = vmatprep.subr.bf16.mxu0 0
        %1343 = vmatpush1.bf16.msra.mxu0 0
        %1344 = vmatprep.mubr.bf16.mxu0 0
        %1345 = vmatmul.mubr.bf16.gmra.mrb[0].mxu0 %v1092
        %v1346 = vpop.f32.mrb[0].mxu0
        %v1347 = vadd.f32 0.0, %v1346
        %v1348 = vpop.f32.mrb[0].mxu0
        %v1349 = vpop.f32.mrb[0].mxu0
        %v1350 = vpop.f32.mrb[0].mxu0
        %1351 = vdwg.mxu0
        %v1353 = vsel %vm524, %v1089, 0
        %1355 = vmatprep.subr.bf16.mxu0 0
        %1356 = vmatpush1.bf16.msra.mxu0 %v1353
        %1357 = vmatprep.subr.bf16.mxu0 0
        %1358 = vmatpush1.bf16.msra.mxu0 0
        %1359 = vmatprep.subr.bf16.mxu0 0
        %1360 = vmatpush1.bf16.msra.mxu0 0
        %1361 = vmatprep.subr.bf16.mxu0 0
        %1362 = vmatpush1.bf16.msra.mxu0 0
        %1363 = vmatprep.subr.bf16.mxu0 0
        %1364 = vmatpush1.bf16.msra.mxu0 0
        %1365 = vmatprep.subr.bf16.mxu0 0
        %1366 = vmatpush1.bf16.msra.mxu0 0
        %1367 = vmatprep.subr.bf16.mxu0 0
        %1368 = vmatpush1.bf16.msra.mxu0 0
        %1369 = vmatprep.subr.bf16.mxu0 0
        %1370 = vmatpush1.bf16.msra.mxu0 0
        %1371 = vmatprep.subr.bf16.mxu0 0
        %1372 = vmatpush1.bf16.msra.mxu0 0
        %1373 = vmatprep.subr.bf16.mxu0 0
        %1374 = vmatpush1.bf16.msra.mxu0 0
        %1375 = vmatprep.subr.bf16.mxu0 0
        %1376 = vmatpush1.bf16.msra.mxu0 0
        %1377 = vmatprep.subr.bf16.mxu0 0
        %1378 = vmatpush1.bf16.msra.mxu0 0
        %1379 = vmatprep.subr.bf16.mxu0 0
        %1380 = vmatpush1.bf16.msra.mxu0 0
        %1381 = vmatprep.subr.bf16.mxu0 0
        %1382 = vmatpush1.bf16.msra.mxu0 0
        %1383 = vmatprep.subr.bf16.mxu0 0
        %1384 = vmatpush1.bf16.msra.mxu0 0
        %1385 = vmatprep.subr.bf16.mxu0 0
        %1386 = vmatpush1.bf16.msra.mxu0 0
        %1387 = vmatprep.mubr.bf16.mxu0 0
        %1388 = vmatmul.mubr.bf16.gmra.mrb[0].mxu0 %v1092
        %v1389 = vpop.f32.mrb[0].mxu0
        %v1390 = vadd.f32 0.0, %v1389
        %v1391 = vpop.f32.mrb[0].mxu0
        %v1392 = vpop.f32.mrb[0].mxu0
        %v1393 = vpop.f32.mrb[0].mxu0
        %1394 = vdwg.mxu0
        %v1396 = vsel %vm524, %v1090, 0
        %1398 = vmatprep.subr.bf16.mxu0 0
        %1399 = vmatpush1.bf16.msra.mxu0 %v1396
        %1400 = vmatprep.subr.bf16.mxu0 0
        %1401 = vmatpush1.bf16.msra.mxu0 0
        %1402 = vmatprep.subr.bf16.mxu0 0
        %1403 = vmatpush1.bf16.msra.mxu0 0
        %1404 = vmatprep.subr.bf16.mxu0 0
        %1405 = vmatpush1.bf16.msra.mxu0 0
        %1406 = vmatprep.subr.bf16.mxu0 0
        %1407 = vmatpush1.bf16.msra.mxu0 0
        %1408 = vmatprep.subr.bf16.mxu0 0
        %1409 = vmatpush1.bf16.msra.mxu0 0
        %1410 = vmatprep.subr.bf16.mxu0 0
        %1411 = vmatpush1.bf16.msra.mxu0 0
        %1412 = vmatprep.subr.bf16.mxu0 0
        %1413 = vmatpush1.bf16.msra.mxu0 0
        %1414 = vmatprep.subr.bf16.mxu0 0
        %1415 = vmatpush1.bf16.msra.mxu0 0
        %1416 = vmatprep.subr.bf16.mxu0 0
        %1417 = vmatpush1.bf16.msra.mxu0 0
        %1418 = vmatprep.subr.bf16.mxu0 0
        %1419 = vmatpush1.bf16.msra.mxu0 0
        %1420 = vmatprep.subr.bf16.mxu0 0
        %1421 = vmatpush1.bf16.msra.mxu0 0
        %1422 = vmatprep.subr.bf16.mxu0 0
        %1423 = vmatpush1.bf16.msra.mxu0 0
        %1424 = vmatprep.subr.bf16.mxu0 0
        %1425 = vmatpush1.bf16.msra.mxu0 0
        %1426 = vmatprep.subr.bf16.mxu0 0
        %1427 = vmatpush1.bf16.msra.mxu0 0
        %1428 = vmatprep.subr.bf16.mxu0 0
        %1429 = vmatpush1.bf16.msra.mxu0 0
        %1430 = vmatprep.mubr.bf16.mxu0 0
        %1431 = vmatmul.mubr.bf16.gmra.mrb[0].mxu0 %v1092
        %v1432 = vpop.f32.mrb[0].mxu0
        %v1433 = vadd.f32 0.0, %v1432
        %v1434 = vpop.f32.mrb[0].mxu0
        %v1435 = vpop.f32.mrb[0].mxu0
        %v1436 = vpop.f32.mrb[0].mxu0
        %1437 = vdwg.mxu0
        %v1438 = vcombine.low %v1132, %v1218
        %v1439 = vcombine.high %v1132, %v1218
        %v1441 = vunpack.c.l.s4 1983009808
        %v1442 = vunpack.c.0.s8 %v1441
        %v1443 = vlaneseq
        %v1444 = vshrl.u32 %v1443, 7
        %v1445 = vsub.s32 %v1442, %v1444
        %v1446 = vrot.slane %v1438, %v1445
        %v1448 = vunpack.c.l.s4 1983009808
        %v1449 = vunpack.c.0.s8 %v1448
        %v1450 = vlaneseq
        %v1451 = vshrl.u32 %v1450, 7
        %v1452 = vsub.s32 %v1449, %v1451
        %v1453 = vrot.slane %v1439, %v1452
        %v1454 = vcombine.low %v1175, %v1261
        %v1455 = vcombine.high %v1175, %v1261
        %v1457 = vunpack.c.l.s4 1983009808
        %v1458 = vunpack.c.0.s8 %v1457
        %v1459 = vlaneseq
        %v1460 = vshrl.u32 %v1459, 7
        %v1461 = vsub.s32 %v1458, %v1460
        %v1462 = vrot.slane %v1454, %v1461
        %v1464 = vunpack.c.l.s4 1983009808
        %v1465 = vunpack.c.0.s8 %v1464
        %v1466 = vlaneseq
        %v1467 = vshrl.u32 %v1466, 7
        %v1468 = vsub.s32 %v1465, %v1467
        %v1469 = vrot.slane %v1455, %v1468
        %v1470 = vcombine.low %v1304, %v1390
        %v1471 = vcombine.high %v1304, %v1390
        %v1473 = vunpack.c.l.s4 1983009808
        %v1474 = vunpack.c.0.s8 %v1473
        %v1475 = vlaneseq
        %v1476 = vshrl.u32 %v1475, 7
        %v1477 = vsub.s32 %v1474, %v1476
        %v1478 = vrot.slane %v1470, %v1477
        %v1480 = vunpack.c.l.s4 1983009808
        %v1481 = vunpack.c.0.s8 %v1480
        %v1482 = vlaneseq
        %v1483 = vshrl.u32 %v1482, 7
        %v1484 = vsub.s32 %v1481, %v1483
        %v1485 = vrot.slane %v1471, %v1484
        %v1486 = vcombine.low %v1347, %v1433
        %v1487 = vcombine.high %v1347, %v1433
        %v1489 = vunpack.c.l.s4 1983009808
        %v1490 = vunpack.c.0.s8 %v1489
        %v1491 = vlaneseq
        %v1492 = vshrl.u32 %v1491, 7
        %v1493 = vsub.s32 %v1490, %v1492
        %v1494 = vrot.slane %v1486, %v1493
        %v1496 = vunpack.c.l.s4 1983009808
        %v1497 = vunpack.c.0.s8 %v1496
        %v1498 = vlaneseq
        %v1499 = vshrl.u32 %v1498, 7
        %v1500 = vsub.s32 %v1497, %v1499
        %v1501 = vrot.slane %v1487, %v1500
        %v1502 = vcombine.low %v1446, %v1462
        %v1503 = vcombine.high %v1446, %v1462
        %v1505 = vunpack.c.l.s4 1934713408
        %v1506 = vunpack.c.0.s8 %v1505
        %v1507 = vlaneseq
        %v1508 = vshrl.u32 %v1507, 7
        %v1509 = vsub.s32 %v1506, %v1508
        %v1510 = vrot.slane %v1502, %v1509
        %v1512 = vunpack.c.l.s4 1934713408
        %v1513 = vunpack.c.0.s8 %v1512
        %v1514 = vlaneseq
        %v1515 = vshrl.u32 %v1514, 7
        %v1516 = vsub.s32 %v1513, %v1515
        %v1517 = vrot.slane %v1503, %v1516
        %v1518 = vcombine.low %v1453, %v1469
        %v1519 = vcombine.high %v1453, %v1469
        %v1521 = vunpack.c.l.s4 1934713408
        %v1522 = vunpack.c.0.s8 %v1521
        %v1523 = vlaneseq
        %v1524 = vshrl.u32 %v1523, 7
        %v1525 = vsub.s32 %v1522, %v1524
        %v1526 = vrot.slane %v1518, %v1525
        %v1528 = vunpack.c.l.s4 1934713408
        %v1529 = vunpack.c.0.s8 %v1528
        %v1530 = vlaneseq
        %v1531 = vshrl.u32 %v1530, 7
        %v1532 = vsub.s32 %v1529, %v1531
        %v1533 = vrot.slane %v1519, %v1532
        %v1534 = vcombine.low %v1478, %v1494
        %v1535 = vcombine.high %v1478, %v1494
        %v1537 = vunpack.c.l.s4 1934713408
        %v1538 = vunpack.c.0.s8 %v1537
        %v1539 = vlaneseq
        %v1540 = vshrl.u32 %v1539, 7
        %v1541 = vsub.s32 %v1538, %v1540
        %v1542 = vrot.slane %v1534, %v1541
        %v1544 = vunpack.c.l.s4 1934713408
        %v1545 = vunpack.c.0.s8 %v1544
        %v1546 = vlaneseq
        %v1547 = vshrl.u32 %v1546, 7
        %v1548 = vsub.s32 %v1545, %v1547
        %v1549 = vrot.slane %v1535, %v1548
        %v1550 = vcombine.low %v1485, %v1501
        %v1551 = vcombine.high %v1485, %v1501
        %v1553 = vunpack.c.l.s4 1934713408
        %v1554 = vunpack.c.0.s8 %v1553
        %v1555 = vlaneseq
        %v1556 = vshrl.u32 %v1555, 7
        %v1557 = vsub.s32 %v1554, %v1556
        %v1558 = vrot.slane %v1550, %v1557
        %v1560 = vunpack.c.l.s4 1934713408
        %v1561 = vunpack.c.0.s8 %v1560
        %v1562 = vlaneseq
        %v1563 = vshrl.u32 %v1562, 7
        %v1564 = vsub.s32 %v1561, %v1563
        %v1565 = vrot.slane %v1551, %v1564
        %v1566 = vcombine.low %v1510, %v1542
        %v1567 = vcombine.high %v1510, %v1542
        %v1568 = vcombine.low %v1517, %v1549
        %v1569 = vcombine.high %v1517, %v1549
        %v1570 = vcombine.low %v1526, %v1558
        %v1571 = vcombine.high %v1526, %v1558
        %v1572 = vcombine.low %v1533, %v1565
        %v1573 = vcombine.high %v1533, %v1565
        %1575 = vrot.lane.b32.xlu0 %v1567, 8
        %v1576 = vpop.permute.xlu0 %1575
        %1579 = vrot.lane.b32.xlu0 %v1568, 16
        %v1580 = vpop.permute.xlu0 %1579
        %1583 = vrot.lane.b32.xlu0 %v1569, 24
        %v1584 = vpop.permute.xlu0 %1583
        %1587 = vrot.lane.b32.xlu0 %v1570, 32
        %v1588 = vpop.permute.xlu0 %1587
        %1591 = vrot.lane.b32.xlu0 %v1571, 40
        %v1592 = vpop.permute.xlu0 %1591
        %1595 = vrot.lane.b32.xlu0 %v1572, 48
        %v1596 = vpop.permute.xlu0 %1595
        %1599 = vrot.lane.b32.xlu0 %v1573, 56
        %v1600 = vpop.permute.xlu0 %1599
        %v1602 = vsel %vm520, %v1566, %v1576
        %vm1603 = vcmask 130048
        %v1604 = vsel %vm1603, %v1602, %v1580
        %vm1605 = vcmask 195584
        %v1606 = vsel %vm1605, %v1604, %v1584
        %v1607 = vsel %vm471, %v1606, %v1588
        %vm1608 = vcmask 326656
        %v1609 = vsel %vm1608, %v1607, %v1592
        %vm1610 = vcmask 392192
        %v1611 = vsel %vm1610, %v1609, %v1596
        %vm1612 = vcmask 457728
        %v1613 = vsel %vm1612, %v1611, %v1600
        %vm1614 = vcmask 523264
        %v1615 = vsel %vm1614, %v1613, -inf
        %1616 = vmax.xlane.f32.xlu0 %v1615
        %v1617 = vpop.xlane.xlu0 %1616
        %v1618 = vsub.f32 %v1613, %v1617
        %v1619 = vmul.f32 %v1618, 1.442695
        %v1620 = vpow.pop %v1619
        %v1621 = vsel %vm1614, %v1620, 0.0
        %1622 = vadd.xlane.f32.xlu0 %v1621
        %v1623 = vpop.xlane.xlu0 %1622
        %v1624 = vrcp.pop %v1623
        %v1625 = vmul.f32 %v1620, %v1624
        %v1626 = vld [vmem:[%s407] sm:$0xf]
        %1627 = vrot.lane.b32.xlu0 %v515, 104
        %v1628 = vpop.permute.xlu0 %1627
        %v1630 = vsel %vm520, %v1628, 0
        %v1633 = vsel %vm524, %v1626, 0
        %1635 = vmatprep.subr.bf16.mxu0 0
        %1636 = vmatpush1.bf16.msra.mxu0 %v1633
        %1637 = vmatprep.subr.bf16.mxu0 0
        %1638 = vmatpush1.bf16.msra.mxu0 0
        %1639 = vmatprep.subr.bf16.mxu0 0
        %1640 = vmatpush1.bf16.msra.mxu0 0
        %1641 = vmatprep.subr.bf16.mxu0 0
        %1642 = vmatpush1.bf16.msra.mxu0 0
        %1643 = vmatprep.subr.bf16.mxu0 0
        %1644 = vmatpush1.bf16.msra.mxu0 0
        %1645 = vmatprep.subr.bf16.mxu0 0
        %1646 = vmatpush1.bf16.msra.mxu0 0
        %1647 = vmatprep.subr.bf16.mxu0 0
        %1648 = vmatpush1.bf16.msra.mxu0 0
        %1649 = vmatprep.subr.bf16.mxu0 0
        %1650 = vmatpush1.bf16.msra.mxu0 0
        %1651 = vmatprep.subr.bf16.mxu0 0
        %1652 = vmatpush1.bf16.msra.mxu0 0
        %1653 = vmatprep.subr.bf16.mxu0 0
        %1654 = vmatpush1.bf16.msra.mxu0 0
        %1655 = vmatprep.subr.bf16.mxu0 0
        %1656 = vmatpush1.bf16.msra.mxu0 0
        %1657 = vmatprep.subr.bf16.mxu0 0
        %1658 = vmatpush1.bf16.msra.mxu0 0
        %1659 = vmatprep.subr.bf16.mxu0 0
        %1660 = vmatpush1.bf16.msra.mxu0 0
        %1661 = vmatprep.subr.bf16.mxu0 0
        %1662 = vmatpush1.bf16.msra.mxu0 0
        %1663 = vmatprep.subr.bf16.mxu0 0
        %1664 = vmatpush1.bf16.msra.mxu0 0
        %1665 = vmatprep.subr.bf16.mxu0 0
        %1666 = vmatpush1.bf16.msra.mxu0 0
        %1667 = vmatprep.mubr.bf16.mxu0 0
        %1668 = vmatmul.mubr.bf16.gmra.mrb[0].mxu0 %v1630
        %v1669 = vpop.f32.mrb[0].mxu0
        %v1670 = vadd.f32 0.0, %v1669
        %v1671 = vpop.f32.mrb[0].mxu0
        %v1672 = vpop.f32.mrb[0].mxu0
        %v1673 = vpop.f32.mrb[0].mxu0
        %1674 = vdwg.mxu0
        %1676 = vrot.lane.b32.xlu0 %v1670, 120
        %v1677 = vpop.permute.xlu0 %1676
        %1679 = vrot.lane.b32.xlu0 %v1670, 112
        %v1680 = vpop.permute.xlu0 %1679
        %1682 = vrot.lane.b32.xlu0 %v1670, 104
        %v1683 = vpop.permute.xlu0 %1682
        %1685 = vrot.lane.b32.xlu0 %v1670, 96
        %v1686 = vpop.permute.xlu0 %1685
        %1688 = vrot.lane.b32.xlu0 %v1670, 88
        %v1689 = vpop.permute.xlu0 %1688
        %1691 = vrot.lane.b32.xlu0 %v1670, 80
        %v1692 = vpop.permute.xlu0 %1691
        %1694 = vrot.lane.b32.xlu0 %v1670, 72
        %v1695 = vpop.permute.xlu0 %1694
        %v1697 = vcombine.low %v1670, %v1680
        %v1698 = vcombine.high %v1670, %v1680
        %v1700 = vunpack.c.l.s4 1983009808
        %v1701 = vunpack.c.0.s8 %v1700
        %v1702 = vlaneseq
        %v1703 = vshrl.u32 %v1702, 7
        %v1704 = vsub.s32 %v1701, %v1703
        %v1705 = vrot.slane %v1697, %v1704
        %v1707 = vunpack.c.l.s4 1983009808
        %v1708 = vunpack.c.0.s8 %v1707
        %v1709 = vlaneseq
        %v1710 = vshrl.u32 %v1709, 7
        %v1711 = vsub.s32 %v1708, %v1710
        %v1712 = vrot.slane %v1698, %v1711
        %v1713 = vcombine.low %v1677, %v1683
        %v1714 = vcombine.high %v1677, %v1683
        %v1716 = vunpack.c.l.s4 1983009808
        %v1717 = vunpack.c.0.s8 %v1716
        %v1718 = vlaneseq
        %v1719 = vshrl.u32 %v1718, 7
        %v1720 = vsub.s32 %v1717, %v1719
        %v1721 = vrot.slane %v1713, %v1720
        %v1723 = vunpack.c.l.s4 1983009808
        %v1724 = vunpack.c.0.s8 %v1723
        %v1725 = vlaneseq
        %v1726 = vshrl.u32 %v1725, 7
        %v1727 = vsub.s32 %v1724, %v1726
        %v1728 = vrot.slane %v1714, %v1727
        %v1729 = vcombine.low %v1686, %v1692
        %v1730 = vcombine.high %v1686, %v1692
        %v1732 = vunpack.c.l.s4 1983009808
        %v1733 = vunpack.c.0.s8 %v1732
        %v1734 = vlaneseq
        %v1735 = vshrl.u32 %v1734, 7
        %v1736 = vsub.s32 %v1733, %v1735
        %v1737 = vrot.slane %v1729, %v1736
        %v1739 = vunpack.c.l.s4 1983009808
        %v1740 = vunpack.c.0.s8 %v1739
        %v1741 = vlaneseq
        %v1742 = vshrl.u32 %v1741, 7
        %v1743 = vsub.s32 %v1740, %v1742
        %v1744 = vrot.slane %v1730, %v1743
        %v1745 = vcombine.low %v1689, %v1695
        %v1746 = vcombine.high %v1689, %v1695
        %v1748 = vunpack.c.l.s4 1983009808
        %v1749 = vunpack.c.0.s8 %v1748
        %v1750 = vlaneseq
        %v1751 = vshrl.u32 %v1750, 7
        %v1752 = vsub.s32 %v1749, %v1751
        %v1753 = vrot.slane %v1745, %v1752
        %v1755 = vunpack.c.l.s4 1983009808
        %v1756 = vunpack.c.0.s8 %v1755
        %v1757 = vlaneseq
        %v1758 = vshrl.u32 %v1757, 7
        %v1759 = vsub.s32 %v1756, %v1758
        %v1760 = vrot.slane %v1746, %v1759
        %v1761 = vcombine.low %v1705, %v1721
        %v1762 = vcombine.high %v1705, %v1721
        %v1764 = vunpack.c.l.s4 1934713408
        %v1765 = vunpack.c.0.s8 %v1764
        %v1766 = vlaneseq
        %v1767 = vshrl.u32 %v1766, 7
        %v1768 = vsub.s32 %v1765, %v1767
        %v1769 = vrot.slane %v1761, %v1768
        %v1771 = vunpack.c.l.s4 1934713408
        %v1772 = vunpack.c.0.s8 %v1771
        %v1773 = vlaneseq
        %v1774 = vshrl.u32 %v1773, 7
        %v1775 = vsub.s32 %v1772, %v1774
        %v1776 = vrot.slane %v1762, %v1775
        %v1777 = vcombine.low %v1712, %v1728
        %v1778 = vcombine.high %v1712, %v1728
        %v1780 = vunpack.c.l.s4 1934713408
        %v1781 = vunpack.c.0.s8 %v1780
        %v1782 = vlaneseq
        %v1783 = vshrl.u32 %v1782, 7
        %v1784 = vsub.s32 %v1781, %v1783
        %v1785 = vrot.slane %v1777, %v1784
        %v1787 = vunpack.c.l.s4 1934713408
        %v1788 = vunpack.c.0.s8 %v1787
        %v1789 = vlaneseq
        %v1790 = vshrl.u32 %v1789, 7
        %v1791 = vsub.s32 %v1788, %v1790
        %v1792 = vrot.slane %v1778, %v1791
        %v1793 = vcombine.low %v1737, %v1753
        %v1794 = vcombine.high %v1737, %v1753
        %v1796 = vunpack.c.l.s4 1934713408
        %v1797 = vunpack.c.0.s8 %v1796
        %v1798 = vlaneseq
        %v1799 = vshrl.u32 %v1798, 7
        %v1800 = vsub.s32 %v1797, %v1799
        %v1801 = vrot.slane %v1793, %v1800
        %v1803 = vunpack.c.l.s4 1934713408
        %v1804 = vunpack.c.0.s8 %v1803
        %v1805 = vlaneseq
        %v1806 = vshrl.u32 %v1805, 7
        %v1807 = vsub.s32 %v1804, %v1806
        %v1808 = vrot.slane %v1794, %v1807
        %v1809 = vcombine.low %v1744, %v1760
        %v1810 = vcombine.high %v1744, %v1760
        %v1812 = vunpack.c.l.s4 1934713408
        %v1813 = vunpack.c.0.s8 %v1812
        %v1814 = vlaneseq
        %v1815 = vshrl.u32 %v1814, 7
        %v1816 = vsub.s32 %v1813, %v1815
        %v1817 = vrot.slane %v1809, %v1816
        %v1819 = vunpack.c.l.s4 1934713408
        %v1820 = vunpack.c.0.s8 %v1819
        %v1821 = vlaneseq
        %v1822 = vshrl.u32 %v1821, 7
        %v1823 = vsub.s32 %v1820, %v1822
        %v1824 = vrot.slane %v1810, %v1823
        %v1825 = vcombine.low %v1769, %v1801
        %v1826 = vcombine.high %v1769, %v1801
        %v1827 = vcombine.low %v1776, %v1808
        %v1828 = vcombine.high %v1776, %v1808
        %v1829 = vcombine.low %v1785, %v1817
        %v1830 = vcombine.high %v1785, %v1817
        %v1831 = vcombine.low %v1792, %v1824
        %v1832 = vcombine.high %v1792, %v1824
        %v1833 = vpack.c.bf16 %v1825, %v1825
        %v1834 = vpack.c.bf16 %v1826, %v1826
        %v1835 = vpack.c.bf16 %v1827, %v1827
        %v1836 = vpack.c.bf16 %v1828, %v1828
        %v1837 = vpack.c.bf16 %v1829, %v1829
        %v1838 = vpack.c.bf16 %v1830, %v1830
        %v1839 = vpack.c.bf16 %v1831, %v1831
        %v1840 = vpack.c.bf16 %v1832, %v1832
        %1841 = vrot.lane.b32.xlu0 %v515, 96
        %v1842 = vpop.permute.xlu0 %1841
        %v1844 = vsel %vm520, %v1842, 0
        %v1847 = vsel %vm524, %v1833, 0
        %1849 = vmatprep.subr.bf16.mxu0 0
        %1850 = vmatpush1.bf16.msra.mxu0 %v1847
        %1851 = vmatprep.subr.bf16.mxu0 0
        %1852 = vmatpush1.bf16.msra.mxu0 0
        %1853 = vmatprep.subr.bf16.mxu0 0
        %1854 = vmatpush1.bf16.msra.mxu0 0
        %1855 = vmatprep.subr.bf16.mxu0 0
        %1856 = vmatpush1.bf16.msra.mxu0 0
        %1857 = vmatprep.subr.bf16.mxu0 0
        %1858 = vmatpush1.bf16.msra.mxu0 0
        %1859 = vmatprep.subr.bf16.mxu0 0
        %1860 = vmatpush1.bf16.msra.mxu0 0
        %1861 = vmatprep.subr.bf16.mxu0 0
        %1862 = vmatpush1.bf16.msra.mxu0 0
        %1863 = vmatprep.subr.bf16.mxu0 0
        %1864 = vmatpush1.bf16.msra.mxu0 0
        %1865 = vmatprep.subr.bf16.mxu0 0
        %1866 = vmatpush1.bf16.msra.mxu0 0
        %1867 = vmatprep.subr.bf16.mxu0 0
        %1868 = vmatpush1.bf16.msra.mxu0 0
        %1869 = vmatprep.subr.bf16.mxu0 0
        %1870 = vmatpush1.bf16.msra.mxu0 0
        %1871 = vmatprep.subr.bf16.mxu0 0
        %1872 = vmatpush1.bf16.msra.mxu0 0
        %1873 = vmatprep.subr.bf16.mxu0 0
        %1874 = vmatpush1.bf16.msra.mxu0 0
        %1875 = vmatprep.subr.bf16.mxu0 0
        %1876 = vmatpush1.bf16.msra.mxu0 0
        %1877 = vmatprep.subr.bf16.mxu0 0
        %1878 = vmatpush1.bf16.msra.mxu0 0
        %1879 = vmatprep.subr.bf16.mxu0 0
        %1880 = vmatpush1.bf16.msra.mxu0 0
        %1881 = vmatprep.mubr.bf16.mxu0 0
        %1882 = vmatmul.mubr.bf16.gmra.mrb[0].mxu0 %v1844
        %v1883 = vpop.f32.mrb[0].mxu0
        %v1884 = vadd.f32 0.0, %v1883
        %v1885 = vpop.f32.mrb[0].mxu0
        %v1886 = vpop.f32.mrb[0].mxu0
        %v1887 = vpop.f32.mrb[0].mxu0
        %1888 = vdwg.mxu0
        %v1890 = vsel %vm524, %v1834, 0
        %1892 = vmatprep.subr.bf16.mxu0 0
        %1893 = vmatpush1.bf16.msra.mxu0 %v1890
        %1894 = vmatprep.subr.bf16.mxu0 0
        %1895 = vmatpush1.bf16.msra.mxu0 0
        %1896 = vmatprep.subr.bf16.mxu0 0
        %1897 = vmatpush1.bf16.msra.mxu0 0
        %1898 = vmatprep.subr.bf16.mxu0 0
        %1899 = vmatpush1.bf16.msra.mxu0 0
        %1900 = vmatprep.subr.bf16.mxu0 0
        %1901 = vmatpush1.bf16.msra.mxu0 0
        %1902 = vmatprep.subr.bf16.mxu0 0
        %1903 = vmatpush1.bf16.msra.mxu0 0
        %1904 = vmatprep.subr.bf16.mxu0 0
        %1905 = vmatpush1.bf16.msra.mxu0 0
        %1906 = vmatprep.subr.bf16.mxu0 0
        %1907 = vmatpush1.bf16.msra.mxu0 0
        %1908 = vmatprep.subr.bf16.mxu0 0
        %1909 = vmatpush1.bf16.msra.mxu0 0
        %1910 = vmatprep.subr.bf16.mxu0 0
        %1911 = vmatpush1.bf16.msra.mxu0 0
        %1912 = vmatprep.subr.bf16.mxu0 0
        %1913 = vmatpush1.bf16.msra.mxu0 0
        %1914 = vmatprep.subr.bf16.mxu0 0
        %1915 = vmatpush1.bf16.msra.mxu0 0
        %1916 = vmatprep.subr.bf16.mxu0 0
        %1917 = vmatpush1.bf16.msra.mxu0 0
        %1918 = vmatprep.subr.bf16.mxu0 0
        %1919 = vmatpush1.bf16.msra.mxu0 0
        %1920 = vmatprep.subr.bf16.mxu0 0
        %1921 = vmatpush1.bf16.msra.mxu0 0
        %1922 = vmatprep.subr.bf16.mxu0 0
        %1923 = vmatpush1.bf16.msra.mxu0 0
        %1924 = vmatprep.mubr.bf16.mxu0 0
        %1925 = vmatmul.mubr.bf16.gmra.mrb[0].mxu0 %v1844
        %v1926 = vpop.f32.mrb[0].mxu0
        %v1927 = vadd.f32 0.0, %v1926
        %v1928 = vpop.f32.mrb[0].mxu0
        %v1929 = vpop.f32.mrb[0].mxu0
        %v1930 = vpop.f32.mrb[0].mxu0
        %1931 = vdwg.mxu0
        %v1933 = vsel %vm524, %v1835, 0
        %1935 = vmatprep.subr.bf16.mxu0 0
        %1936 = vmatpush1.bf16.msra.mxu0 %v1933
        %1937 = vmatprep.subr.bf16.mxu0 0
        %1938 = vmatpush1.bf16.msra.mxu0 0
        %1939 = vmatprep.subr.bf16.mxu0 0
        %1940 = vmatpush1.bf16.msra.mxu0 0
        %1941 = vmatprep.subr.bf16.mxu0 0
        %1942 = vmatpush1.bf16.msra.mxu0 0
        %1943 = vmatprep.subr.bf16.mxu0 0
        %1944 = vmatpush1.bf16.msra.mxu0 0
        %1945 = vmatprep.subr.bf16.mxu0 0
        %1946 = vmatpush1.bf16.msra.mxu0 0
        %1947 = vmatprep.subr.bf16.mxu0 0
        %1948 = vmatpush1.bf16.msra.mxu0 0
        %1949 = vmatprep.subr.bf16.mxu0 0
        %1950 = vmatpush1.bf16.msra.mxu0 0
        %1951 = vmatprep.subr.bf16.mxu0 0
        %1952 = vmatpush1.bf16.msra.mxu0 0
        %1953 = vmatprep.subr.bf16.mxu0 0
        %1954 = vmatpush1.bf16.msra.mxu0 0
        %1955 = vmatprep.subr.bf16.mxu0 0
        %1956 = vmatpush1.bf16.msra.mxu0 0
        %1957 = vmatprep.subr.bf16.mxu0 0
        %1958 = vmatpush1.bf16.msra.mxu0 0
        %1959 = vmatprep.subr.bf16.mxu0 0
        %1960 = vmatpush1.bf16.msra.mxu0 0
        %1961 = vmatprep.subr.bf16.mxu0 0
        %1962 = vmatpush1.bf16.msra.mxu0 0
        %1963 = vmatprep.subr.bf16.mxu0 0
        %1964 = vmatpush1.bf16.msra.mxu0 0
        %1965 = vmatprep.subr.bf16.mxu0 0
        %1966 = vmatpush1.bf16.msra.mxu0 0
        %1967 = vmatprep.mubr.bf16.mxu0 0
        %1968 = vmatmul.mubr.bf16.gmra.mrb[0].mxu0 %v1844
        %v1969 = vpop.f32.mrb[0].mxu0
        %v1970 = vadd.f32 0.0, %v1969
        %v1971 = vpop.f32.mrb[0].mxu0
        %v1972 = vpop.f32.mrb[0].mxu0
        %v1973 = vpop.f32.mrb[0].mxu0
        %1974 = vdwg.mxu0
        %v1976 = vsel %vm524, %v1836, 0
        %1978 = vmatprep.subr.bf16.mxu0 0
        %1979 = vmatpush1.bf16.msra.mxu0 %v1976
        %1980 = vmatprep.subr.bf16.mxu0 0
        %1981 = vmatpush1.bf16.msra.mxu0 0
        %1982 = vmatprep.subr.bf16.mxu0 0
        %1983 = vmatpush1.bf16.msra.mxu0 0
        %1984 = vmatprep.subr.bf16.mxu0 0
        %1985 = vmatpush1.bf16.msra.mxu0 0
        %1986 = vmatprep.subr.bf16.mxu0 0
        %1987 = vmatpush1.bf16.msra.mxu0 0
        %1988 = vmatprep.subr.bf16.mxu0 0
        %1989 = vmatpush1.bf16.msra.mxu0 0
        %1990 = vmatprep.subr.bf16.mxu0 0
        %1991 = vmatpush1.bf16.msra.mxu0 0
        %1992 = vmatprep.subr.bf16.mxu0 0
        %1993 = vmatpush1.bf16.msra.mxu0 0
        %1994 = vmatprep.subr.bf16.mxu0 0
        %1995 = vmatpush1.bf16.msra.mxu0 0
        %1996 = vmatprep.subr.bf16.mxu0 0
        %1997 = vmatpush1.bf16.msra.mxu0 0
        %1998 = vmatprep.subr.bf16.mxu0 0
        %1999 = vmatpush1.bf16.msra.mxu0 0
        %2000 = vmatprep.subr.bf16.mxu0 0
        %2001 = vmatpush1.bf16.msra.mxu0 0
        %2002 = vmatprep.subr.bf16.mxu0 0
        %2003 = vmatpush1.bf16.msra.mxu0 0
        %2004 = vmatprep.subr.bf16.mxu0 0
        %2005 = vmatpush1.bf16.msra.mxu0 0
        %2006 = vmatprep.subr.bf16.mxu0 0
        %2007 = vmatpush1.bf16.msra.mxu0 0
        %2008 = vmatprep.subr.bf16.mxu0 0
        %2009 = vmatpush1.bf16.msra.mxu0 0
        %2010 = vmatprep.mubr.bf16.mxu0 0
        %2011 = vmatmul.mubr.bf16.gmra.mrb[0].mxu0 %v1844
        %v2012 = vpop.f32.mrb[0].mxu0
        %v2013 = vadd.f32 0.0, %v2012
        %v2014 = vpop.f32.mrb[0].mxu0
        %v2015 = vpop.f32.mrb[0].mxu0
        %v2016 = vpop.f32.mrb[0].mxu0
        %2017 = vdwg.mxu0
        %v2019 = vsel %vm524, %v1837, 0
        %2021 = vmatprep.subr.bf16.mxu0 0
        %2022 = vmatpush1.bf16.msra.mxu0 %v2019
        %2023 = vmatprep.subr.bf16.mxu0 0
        %2024 = vmatpush1.bf16.msra.mxu0 0
        %2025 = vmatprep.subr.bf16.mxu0 0
        %2026 = vmatpush1.bf16.msra.mxu0 0
        %2027 = vmatprep.subr.bf16.mxu0 0
        %2028 = vmatpush1.bf16.msra.mxu0 0
        %2029 = vmatprep.subr.bf16.mxu0 0
        %2030 = vmatpush1.bf16.msra.mxu0 0
        %2031 = vmatprep.subr.bf16.mxu0 0
        %2032 = vmatpush1.bf16.msra.mxu0 0
        %2033 = vmatprep.subr.bf16.mxu0 0
        %2034 = vmatpush1.bf16.msra.mxu0 0
        %2035 = vmatprep.subr.bf16.mxu0 0
        %2036 = vmatpush1.bf16.msra.mxu0 0
        %2037 = vmatprep.subr.bf16.mxu0 0
        %2038 = vmatpush1.bf16.msra.mxu0 0
        %2039 = vmatprep.subr.bf16.mxu0 0
        %2040 = vmatpush1.bf16.msra.mxu0 0
        %2041 = vmatprep.subr.bf16.mxu0 0
        %2042 = vmatpush1.bf16.msra.mxu0 0
        %2043 = vmatprep.subr.bf16.mxu0 0
        %2044 = vmatpush1.bf16.msra.mxu0 0
        %2045 = vmatprep.subr.bf16.mxu0 0
        %2046 = vmatpush1.bf16.msra.mxu0 0
        %2047 = vmatprep.subr.bf16.mxu0 0
        %2048 = vmatpush1.bf16.msra.mxu0 0
        %2049 = vmatprep.subr.bf16.mxu0 0
        %2050 = vmatpush1.bf16.msra.mxu0 0
        %2051 = vmatprep.subr.bf16.mxu0 0
        %2052 = vmatpush1.bf16.msra.mxu0 0
        %2053 = vmatprep.mubr.bf16.mxu0 0
        %2054 = vmatmul.mubr.bf16.gmra.mrb[0].mxu0 %v1844
        %v2055 = vpop.f32.mrb[0].mxu0
        %v2056 = vadd.f32 0.0, %v2055
        %v2057 = vpop.f32.mrb[0].mxu0
        %v2058 = vpop.f32.mrb[0].mxu0
        %v2059 = vpop.f32.mrb[0].mxu0
        %2060 = vdwg.mxu0
        %v2062 = vsel %vm524, %v1838, 0
        %2064 = vmatprep.subr.bf16.mxu0 0
        %2065 = vmatpush1.bf16.msra.mxu0 %v2062
        %2066 = vmatprep.subr.bf16.mxu0 0
        %2067 = vmatpush1.bf16.msra.mxu0 0
        %2068 = vmatprep.subr.bf16.mxu0 0
        %2069 = vmatpush1.bf16.msra.mxu0 0
        %2070 = vmatprep.subr.bf16.mxu0 0
        %2071 = vmatpush1.bf16.msra.mxu0 0
        %2072 = vmatprep.subr.bf16.mxu0 0
        %2073 = vmatpush1.bf16.msra.mxu0 0
        %2074 = vmatprep.subr.bf16.mxu0 0
        %2075 = vmatpush1.bf16.msra.mxu0 0
        %2076 = vmatprep.subr.bf16.mxu0 0
        %2077 = vmatpush1.bf16.msra.mxu0 0
        %2078 = vmatprep.subr.bf16.mxu0 0
        %2079 = vmatpush1.bf16.msra.mxu0 0
        %2080 = vmatprep.subr.bf16.mxu0 0
        %2081 = vmatpush1.bf16.msra.mxu0 0
        %2082 = vmatprep.subr.bf16.mxu0 0
        %2083 = vmatpush1.bf16.msra.mxu0 0
        %2084 = vmatprep.subr.bf16.mxu0 0
        %2085 = vmatpush1.bf16.msra.mxu0 0
        %2086 = vmatprep.subr.bf16.mxu0 0
        %2087 = vmatpush1.bf16.msra.mxu0 0
        %2088 = vmatprep.subr.bf16.mxu0 0
        %2089 = vmatpush1.bf16.msra.mxu0 0
        %2090 = vmatprep.subr.bf16.mxu0 0
        %2091 = vmatpush1.bf16.msra.mxu0 0
        %2092 = vmatprep.subr.bf16.mxu0 0
        %2093 = vmatpush1.bf16.msra.mxu0 0
        %2094 = vmatprep.subr.bf16.mxu0 0
        %2095 = vmatpush1.bf16.msra.mxu0 0
        %2096 = vmatprep.mubr.bf16.mxu0 0
        %2097 = vmatmul.mubr.bf16.gmra.mrb[0].mxu0 %v1844
        %v2098 = vpop.f32.mrb[0].mxu0
        %v2099 = vadd.f32 0.0, %v2098
        %v2100 = vpop.f32.mrb[0].mxu0
        %v2101 = vpop.f32.mrb[0].mxu0
        %v2102 = vpop.f32.mrb[0].mxu0
        %2103 = vdwg.mxu0
        %v2105 = vsel %vm524, %v1839, 0
        %2107 = vmatprep.subr.bf16.mxu0 0
        %2108 = vmatpush1.bf16.msra.mxu0 %v2105
        %2109 = vmatprep.subr.bf16.mxu0 0
        %2110 = vmatpush1.bf16.msra.mxu0 0
        %2111 = vmatprep.subr.bf16.mxu0 0
        %2112 = vmatpush1.bf16.msra.mxu0 0
        %2113 = vmatprep.subr.bf16.mxu0 0
        %2114 = vmatpush1.bf16.msra.mxu0 0
        %2115 = vmatprep.subr.bf16.mxu0 0
        %2116 = vmatpush1.bf16.msra.mxu0 0
        %2117 = vmatprep.subr.bf16.mxu0 0
        %2118 = vmatpush1.bf16.msra.mxu0 0
        %2119 = vmatprep.subr.bf16.mxu0 0
        %2120 = vmatpush1.bf16.msra.mxu0 0
        %2121 = vmatprep.subr.bf16.mxu0 0
        %2122 = vmatpush1.bf16.msra.mxu0 0
        %2123 = vmatprep.subr.bf16.mxu0 0
        %2124 = vmatpush1.bf16.msra.mxu0 0
        %2125 = vmatprep.subr.bf16.mxu0 0
        %2126 = vmatpush1.bf16.msra.mxu0 0
        %2127 = vmatprep.subr.bf16.mxu0 0
        %2128 = vmatpush1.bf16.msra.mxu0 0
        %2129 = vmatprep.subr.bf16.mxu0 0
        %2130 = vmatpush1.bf16.msra.mxu0 0
        %2131 = vmatprep.subr.bf16.mxu0 0
        %2132 = vmatpush1.bf16.msra.mxu0 0
        %2133 = vmatprep.subr.bf16.mxu0 0
        %2134 = vmatpush1.bf16.msra.mxu0 0
        %2135 = vmatprep.subr.bf16.mxu0 0
        %2136 = vmatpush1.bf16.msra.mxu0 0
        %2137 = vmatprep.subr.bf16.mxu0 0
        %2138 = vmatpush1.bf16.msra.mxu0 0
        %2139 = vmatprep.mubr.bf16.mxu0 0
        %2140 = vmatmul.mubr.bf16.gmra.mrb[0].mxu0 %v1844
        %v2141 = vpop.f32.mrb[0].mxu0
        %v2142 = vadd.f32 0.0, %v2141
        %v2143 = vpop.f32.mrb[0].mxu0
        %v2144 = vpop.f32.mrb[0].mxu0
        %v2145 = vpop.f32.mrb[0].mxu0
        %2146 = vdwg.mxu0
        %v2148 = vsel %vm524, %v1840, 0
        %2150 = vmatprep.subr.bf16.mxu0 0
        %2151 = vmatpush1.bf16.msra.mxu0 %v2148
        %2152 = vmatprep.subr.bf16.mxu0 0
        %2153 = vmatpush1.bf16.msra.mxu0 0
        %2154 = vmatprep.subr.bf16.mxu0 0
        %2155 = vmatpush1.bf16.msra.mxu0 0
        %2156 = vmatprep.subr.bf16.mxu0 0
        %2157 = vmatpush1.bf16.msra.mxu0 0
        %2158 = vmatprep.subr.bf16.mxu0 0
        %2159 = vmatpush1.bf16.msra.mxu0 0
        %2160 = vmatprep.subr.bf16.mxu0 0
        %2161 = vmatpush1.bf16.msra.mxu0 0
        %2162 = vmatprep.subr.bf16.mxu0 0
        %2163 = vmatpush1.bf16.msra.mxu0 0
        %2164 = vmatprep.subr.bf16.mxu0 0
        %2165 = vmatpush1.bf16.msra.mxu0 0
        %2166 = vmatprep.subr.bf16.mxu0 0
        %2167 = vmatpush1.bf16.msra.mxu0 0
        %2168 = vmatprep.subr.bf16.mxu0 0
        %2169 = vmatpush1.bf16.msra.mxu0 0
        %2170 = vmatprep.subr.bf16.mxu0 0
        %2171 = vmatpush1.bf16.msra.mxu0 0
        %2172 = vmatprep.subr.bf16.mxu0 0
        %2173 = vmatpush1.bf16.msra.mxu0 0
        %2174 = vmatprep.subr.bf16.mxu0 0
        %2175 = vmatpush1.bf16.msra.mxu0 0
        %2176 = vmatprep.subr.bf16.mxu0 0
        %2177 = vmatpush1.bf16.msra.mxu0 0
        %2178 = vmatprep.subr.bf16.mxu0 0
        %2179 = vmatpush1.bf16.msra.mxu0 0
        %2180 = vmatprep.subr.bf16.mxu0 0
        %2181 = vmatpush1.bf16.msra.mxu0 0
        %2182 = vmatprep.mubr.bf16.mxu0 0
        %2183 = vmatmul.mubr.bf16.gmra.mrb[0].mxu0 %v1844
        %v2184 = vpop.f32.mrb[0].mxu0
        %v2185 = vadd.f32 0.0, %v2184
        %v2186 = vpop.f32.mrb[0].mxu0
        %v2187 = vpop.f32.mrb[0].mxu0
        %v2188 = vpop.f32.mrb[0].mxu0
        %2189 = vdwg.mxu0
        %v2190 = vpack.c.bf16 %v1927, %v1884
        %v2191 = vpack.c.bf16 %v2013, %v1970
        %v2192 = vpack.c.bf16 %v2099, %v2056
        %v2193 = vpack.c.bf16 %v2185, %v2142
        %v2194 = vpack.c.bf16 %v1625, %v1625
        %v2196 = vsel %vm1614, %v2194, 0
        %2198 = vmatprep.subr.bf16.mxu0 0
        %2199 = vmatpush1.bf16.msra.mxu0 %v2190
        %2200 = vmatprep.subr.bf16.mxu0 0
        %2201 = vmatpush1.bf16.msra.mxu0 %v2191
        %2202 = vmatprep.subr.bf16.mxu0 0
        %2203 = vmatpush1.bf16.msra.mxu0 %v2192
        %2204 = vmatprep.subr.bf16.mxu0 0
        %2205 = vmatpush1.bf16.msra.mxu0 %v2193
        %2206 = vmatprep.subr.bf16.mxu0 0
        %2207 = vmatpush1.bf16.msra.mxu0 0
        %2208 = vmatprep.subr.bf16.mxu0 0
        %2209 = vmatpush1.bf16.msra.mxu0 0
        %2210 = vmatprep.subr.bf16.mxu0 0
        %2211 = vmatpush1.bf16.msra.mxu0 0
        %2212 = vmatprep.subr.bf16.mxu0 0
        %2213 = vmatpush1.bf16.msra.mxu0 0
        %2214 = vmatprep.subr.bf16.mxu0 0
        %2215 = vmatpush1.bf16.msra.mxu0 0
        %2216 = vmatprep.subr.bf16.mxu0 0
        %2217 = vmatpush1.bf16.msra.mxu0 0
        %2218 = vmatprep.subr.bf16.mxu0 0
        %2219 = vmatpush1.bf16.msra.mxu0 0
        %2220 = vmatprep.subr.bf16.mxu0 0
        %2221 = vmatpush1.bf16.msra.mxu0 0
        %2222 = vmatprep.subr.bf16.mxu0 0
        %2223 = vmatpush1.bf16.msra.mxu0 0
        %2224 = vmatprep.subr.bf16.mxu0 0
        %2225 = vmatpush1.bf16.msra.mxu0 0
        %2226 = vmatprep.subr.bf16.mxu0 0
        %2227 = vmatpush1.bf16.msra.mxu0 0
        %2228 = vmatprep.subr.bf16.mxu0 0
        %2229 = vmatpush1.bf16.msra.mxu0 0
        %2230 = vmatprep.mubr.bf16.mxu0 0
        %2231 = vmatmul.mubr.bf16.gmra.mrb[0].mxu0 %v2196
        %v2232 = vpop.f32.mrb[0].mxu0
        %v2233 = vadd.f32 0.0, %v2232
        %v2234 = vpop.f32.mrb[0].mxu0
        %v2235 = vpop.f32.mrb[0].mxu0
        %v2236 = vpop.f32.mrb[0].mxu0
        %2237 = vdwg.mxu0
        %s2238 = smul.u32 %s28, 8
        %s2239 = scalar_lea.vmem [#allocation2], %s2238
        %2240 = vst.msk [vmem:[%s2239] sm:$0xff] %vm520, %v2233
        %p2241 = scmp.eq.s32.totalorder %s28, 3
        // Predicated region
        $region61: #{trittention_cube.1} parent=55 // pred_check
          %p2242 = pneg %p2241
        $region62: #{trittention_cube.1} parent=55 // pred_check_branch
          %2244 = sbr.rel (%p2242) target = $region64
        $region63: #{trittention_cube.1} parent=55 // pred_region
          %v2245 = vld [vmem:[#allocation2] sm:$0xff]
          %s2246 = scalar_lea.vmem [#allocation2], 8
          %v2247 = vld [vmem:[%s2246] sm:$0xff]
          %s2248 = scalar_lea.vmem [#allocation2], 16
          %v2249 = vld [vmem:[%s2248] sm:$0xff]
          %s2250 = scalar_lea.vmem [#allocation2], 24
          %v2251 = vld [vmem:[%s2250] sm:$0xff]
          %2253 = vrot.lane.b32.xlu0 %v2247, 8
          %v2254 = vpop.permute.xlu0 %2253
          %2257 = vrot.lane.b32.xlu0 %v2249, 16
          %v2258 = vpop.permute.xlu0 %2257
          %2261 = vrot.lane.b32.xlu0 %v2251, 24
          %v2262 = vpop.permute.xlu0 %2261
          %v2264 = vsel %vm520, %v2245, %v2254
          %v2265 = vsel %vm1603, %v2264, %v2258
          %v2266 = vsel %vm1605, %v2265, %v2262
          %v2267 = vpack.c.bf16 %v2266, %v2266
          %v2268 = vld [vmem:[%s7] sm:$0xf]
          %v2269 = vld [vmem:[%s7 + $0x4] sm:$0xf]
          %v2270 = vld [vmem:[%s7 + $0x8] sm:$0xf]
          %v2271 = vld [vmem:[%s7 + $0xc] sm:$0xf]
          %v2272 = vld [vmem:[%s8] sm:$0x1]
          %v2274 = vlaneseq
          %v2275 = vshrl.u32 %v2274, 7
          %v2276 = vsub.s32 0, %v2275
          %v2277 = vrot.slane %v2272, %v2276
          %v2283 = vunpack.c.l.b16 %v2268
          %v2284 = vunpack.c.l.b16 %v2269
          %v2285 = vunpack.c.l.b16 %v2270
          %v2286 = vunpack.c.l.b16 %v2271
          %v2287 = vpack.c.b16 %v2284, %v2283
          %v2288 = vpack.c.b16 %v2286, %v2285
          %v2292 = vsel %vm471, %v2267, 0
          %2294 = vmatprep.subr.bf16.mxu0 0
          %2295 = vmatpush1.bf16.msra.mxu0 %v2287
          %2296 = vmatprep.subr.bf16.mxu0 0
          %2297 = vmatpush1.bf16.msra.mxu0 %v2288
          %2298 = vmatprep.subr.bf16.mxu0 0
          %2299 = vmatpush1.bf16.msra.mxu0 0
          %2300 = vmatprep.subr.bf16.mxu0 0
          %2301 = vmatpush1.bf16.msra.mxu0 0
          %2302 = vmatprep.subr.bf16.mxu0 0
          %2303 = vmatpush1.bf16.msra.mxu0 0
          %2304 = vmatprep.subr.bf16.mxu0 0
          %2305 = vmatpush1.bf16.msra.mxu0 0
          %2306 = vmatprep.subr.bf16.mxu0 0
          %2307 = vmatpush1.bf16.msra.mxu0 0
          %2308 = vmatprep.subr.bf16.mxu0 0
          %2309 = vmatpush1.bf16.msra.mxu0 0
          %2310 = vmatprep.subr.bf16.mxu0 0
          %2311 = vmatpush1.bf16.msra.mxu0 0
          %2312 = vmatprep.subr.bf16.mxu0 0
          %2313 = vmatpush1.bf16.msra.mxu0 0
          %2314 = vmatprep.subr.bf16.mxu0 0
          %2315 = vmatpush1.bf16.msra.mxu0 0
          %2316 = vmatprep.subr.bf16.mxu0 0
          %2317 = vmatpush1.bf16.msra.mxu0 0
          %2318 = vmatprep.subr.bf16.mxu0 0
          %2319 = vmatpush1.bf16.msra.mxu0 0
          %2320 = vmatprep.subr.bf16.mxu0 0
          %2321 = vmatpush1.bf16.msra.mxu0 0
          %2322 = vmatprep.subr.bf16.mxu0 0
          %2323 = vmatpush1.bf16.msra.mxu0 0
          %2324 = vmatprep.subr.bf16.mxu0 0
          %2325 = vmatpush1.bf16.msra.mxu0 0
          %2326 = vmatprep.mubr.bf16.mxu0 0
          %2327 = vmatmul.mubr.bf16.gmra.mrb[0].mxu0 %v2292
          %v2328 = vpop.f32.mrb[0].mxu0
          %v2329 = vadd.f32 %v2277, %v2328
          %v2330 = vpop.f32.mrb[0].mxu0
          %v2331 = vpop.f32.mrb[0].mxu0
          %v2332 = vpop.f32.mrb[0].mxu0
          %2333 = vdwg.mxu0
          %2334 = vst.msk [vmem:[%s387] sm:$0xff] %vm471, %v2329
        $region64: #{trittention_cube.1} parent=55 // pred_fallthru
          _
        %s2335 = sand.u32 %s257, 1
        %s2336 = scalar_lea.sflag [#allocation5], %s2335
        %s2337 = sand.u32 %s257, 1
        %s2338 = smul.addr %s2337, 8
        %s2339 = scalar_lea.vmem [#allocation4], %s2338
        // Predicated region
        $region65: #{trittention_cube.1} parent=55 // pred_check
          %p2340 = pneg %p267
        $region66: #{trittention_cube.1} parent=55 // pred_check_branch
          %2342 = sbr.rel (%p2340) target = $region68
        $region67: #{trittention_cube.1} parent=55 // pred_region
          %s2344 = ssub.s32 128, 128
          %2345 = vsyncadd %s2336, %s2344
          %s2346 = smul.addr %s27, 128
          %s2347 = scalar_lea.hbm %s9, %s2346
          %s2349 = sshll.u32 %s2339, 4
          %s2350 = int_to_ptr.vmem [resolvable:$true] %s2349
          %2352 = dma.vmem_to_hbm [thread:$0]  %s2350, 128, %s2347, %s2336
        $region68: #{trittention_cube.1} parent=55 // pred_fallthru
          _
      $region56: #{trittention_cube.1} parent=5 // pred_fallthru
        _
      %p2353 = scmp.le.s32.totalorder 2, %s18
      // Predicated region
      $region69: #{trittention_cube.1} parent=5 // pred_check
        %p2354 = pneg %p2353
      $region70: #{trittention_cube.1} parent=5 // pred_check_branch
        %2356 = sbr.rel (%p2354) target = $region72
      $region71: #{trittention_cube.1} parent=5 // pred_region
        %s2357 = ssub.s32 %s18, 2
        // Predicated region
        $region73: #{trittention_cube.1} parent=71 // pred_check
          %p2358 = pneg %p273
        $region74: #{trittention_cube.1} parent=71 // pred_check_branch
          %2360 = sbr.rel (%p2358) target = $region76
        $region75: #{trittention_cube.1} parent=71 // pred_region
          %s2361 = sand.u32 %s258, 1
          %s2362 = scalar_lea.sflag [#allocation5], %s2361
          %s2363 = sand.u32 %s258, 1
          %s2364 = smul.addr %s2363, 8
          %s2365 = scalar_lea.vmem [#allocation4], %s2364
          %2366 = dma.done %s2362, 128
        $region76: #{trittention_cube.1} parent=71 // pred_fallthru
          _
      $region72: #{trittention_cube.1} parent=5 // pred_fallthru
        _
    $region6: #{trittention_cube.1} parent=1 // loop_footer
      %s22 = sadd.s32 1, %s18
    $region7: #{trittention_cube.1} parent=1 // loop_footer_branch
      %17 = sbr.rel target = $region3
    $region8: #{trittention_cube.1} parent=1 // loop_exit
      _
    %2367 = vsyncpa [#allocation5], 1
    %s2368 = scalar_lea.sflag [#allocation5], 1
    %2369 = vsyncpa %s2368, 1

</llo_original>
